<compile_context>
chip_gen: v6e
topology: v6e:2x2x1
jax: 0.10.0
libtpu: 0.0.40
codegen_flags: <defaults>
</compile_context>

<pallas_src>
import functools

import jax
import jax.numpy as jnp
from jax import lax
from jax.experimental import pallas as pl
from jax.experimental.pallas import tpu as pltpu


# ---------------------------------------------------------------------------
# Pallas kernel (one grid step = one (batch block, time chunk))
# ---------------------------------------------------------------------------
def _cnn_bilstm_kernel(
    x_ref,       # (Tc, Bb, 3D) bf16  im2col'd chunk: [x[t-1] | x[t] | x[t+1]]
    wconv_ref,   # (3D, H)      bf16  conv taps stacked on K
    bconv_ref,   # (1, H)       f32
    wih_f_ref,   # (H, 4H)      bf16  forward  W_ih^T, gate cols [i|f|o|g]
    whh_f_ref,   # (H, 4H)      bf16  forward  W_hh^T, gate cols [i|f|o|g]
    b_f_ref,     # (1, 4H)      f32   forward  b_ih + b_hh,      [i|f|o|g]
    wih_b_ref,   # (H, 4H)      bf16  backward W_ih^T,           [i|f|o|g]
    b_b_ref,     # (1, 4H)      f32   backward b_ih + b_hh,      [i|f|o|g]
    wfc_ref,     # (2H, C)      bf16  fc weight^T
    bfc_ref,     # (1, C)       f32
    out_ref,     # (Bb, C)      f32   output probabilities (written on last chunk)
    xg_ref,      # scratch (Tc, Bb, 4H) bf16  hoisted x-part of forward gates
    h_ref,       # scratch (Bb, H) f32        forward hidden state carried over chunks
    c_ref,       # scratch (Bb, H) f32        forward cell   state carried over chunks
    *,
    Tc: int, Bb: int, D: int, H: int, C: int, multi_label: bool,
):
    H3 = 3 * H
    H4 = 4 * H
    t_chunk = pl.program_id(1)
    n_chunks = pl.num_programs(1)

    # ---- reset carried state at the start of each batch block's sequence --------
    @pl.when(t_chunk == 0)
    def _():
        h_ref[...] = jnp.zeros_like(h_ref)
        c_ref[...] = jnp.zeros_like(c_ref)

    # ---- Conv1d(kernel=3, padding=1) + ReLU: one im2col-on-K MXU matmul ---------
    xv = x_ref[...]                                                   # (Tc, Bb, 3D)
    conv = jnp.dot(xv.reshape(Tc * Bb, 3 * D), wconv_ref[...],
                   preferred_element_type=jnp.float32) + bconv_ref[...]
    conv = jnp.maximum(conv, jnp.float32(0.0))                        # (Tc*Bb, H) f32
    conv_b = conv.astype(jnp.bfloat16).reshape(Tc, Bb, H)

    # ---- hoisted input projection of the forward LSTM for this chunk ------------
    # (stored bf16; bias add + recurrent accumulation stay f32 inside the loop)
    xg = jnp.dot(conv_b.reshape(Tc * Bb, H), wih_f_ref[...],
                 preferred_element_type=jnp.float32)
    xg_ref[...] = xg.reshape(Tc, Bb, H4).astype(jnp.bfloat16)

    whh_f = whh_f_ref[...]                                            # bf16, load once
    b_f = b_f_ref[...]                                                # (1, 4H) f32

    def cell(gates, c):
        # gate order [i | f | o | g]: sigmoid on 3H lanes, tanh on H lanes (EUP)
        sig = jax.nn.sigmoid(gates[:, 0:H3])
        g = jnp.tanh(gates[:, H3:H4])
        i = sig[:, 0:H]
        f = sig[:, H:2 * H]
        o = sig[:, 2 * H:H3]
        c_new = f * c + i * g
        h_new = o * jnp.tanh(c_new)
        return h_new, c_new

    # ---- forward recurrence over this chunk: only h @ W_hh remains serial -------
    def fwd_body(t, carry):
        h, c = carry
        gates = (xg_ref[t].astype(jnp.float32) + b_f
                 + jnp.dot(h.astype(jnp.bfloat16), whh_f,
                           preferred_element_type=jnp.float32))
        return cell(gates, c)

    h_f, c_f = lax.fori_loop(0, Tc, fwd_body, (h_ref[...], c_ref[...]),
                             unroll=min(Tc, 8))
    h_ref[...] = h_f
    c_ref[...] = c_f

    # ---- last chunk: backward one-step + FC + output nonlinearity ---------------
    @pl.when(t_chunk == n_chunks - 1)
    def _():
        # lstm_out[:, -1, H:] == ONE reverse step from zero state (exact)
        gates_b = (jnp.dot(conv_b[Tc - 1], wih_b_ref[...],
                           preferred_element_type=jnp.float32) + b_b_ref[...])
        h_b, _ = cell(gates_b, jnp.zeros((Bb, H), jnp.float32))

        wfc = wfc_ref[...]
        logits = (
            jnp.dot(h_f.astype(jnp.bfloat16), wfc[0:H, :],
                    preferred_element_type=jnp.float32)
            + jnp.dot(h_b.astype(jnp.bfloat16), wfc[H:2 * H, :],
                      preferred_element_type=jnp.float32)
            + bfc_ref[...]
        )                                                             # (Bb, C) f32

        if multi_label:
            out_ref[...] = jax.nn.sigmoid(logits)
        else:
            m = jnp.max(logits, axis=1, keepdims=True)
            e = jnp.exp(logits - m)
            out_ref[...] = e / jnp.sum(e, axis=1, keepdims=True)


# ---------------------------------------------------------------------------
# Wrapper: layout plumbing + pallas_call with (batch-block, time-chunk) grid
# ---------------------------------------------------------------------------
def _largest_divisor_leq(n, cap):
    best = 1
    for d in range(1, min(n, cap) + 1):
        if n % d == 0:
            best = d
    return best


def _vmem_budget_bytes(Tc, Bb, D, H, C):
    x_chunk = 2 * Tc * Bb * 3 * D * 2          # double-buffered bf16 input chunk
    xg = Tc * Bb * 4 * H * 2                   # bf16 scratch
    hc = 2 * Bb * H * 4
    weights = (3 * D * H + 2 * H * 4 * H + 2 * H * C) * 2 \
        + (H + 2 * 4 * H + C) * 4
    out = 2 * Bb * C * 4
    interm = Tc * Bb * H * 4 + Tc * Bb * 4 * H * 4   # f32 conv / xg intermediates
    total = x_chunk + xg + hc + weights + out + interm
    return int(min(max(2 * total + (4 << 20), 16 << 20), 64 << 20))


def cnn_bilstm(x, params, *, hidden_dim, num_classes, multi_label=False,
               time_chunk_target=32):
    B, T, D = x.shape
    H = hidden_dim
    C = num_classes

    # batch padded to a multiple of 16 (bf16 sublane packing)
    B_pad = max(16, ((B + 15) // 16) * 16)
    # batch block (grid axis 0, "parallel" -> megacore sharding on v7x)
    Bb = 16
    for cand in (64, 48, 32, 16):
        if cand <= B_pad and B_pad % cand == 0:
            Bb = cand
            break
    nb = B_pad // Bb

    # time chunk (grid axis 1, "arbitrary" carried recurrence); must divide T
    Tc = _largest_divisor_leq(T, time_chunk_target)
    nt = T // Tc

    bf16 = lambda a: a.astype(jnp.bfloat16)

    # ---- im2col on the time axis: feature dim becomes [x[t-1] | x[t] | x[t+1]] --
    x_t = jnp.transpose(x.astype(jnp.float32), (1, 0, 2))             # (T, B, D)
    x_t = jnp.pad(x_t, ((1, 1), (0, B_pad - B), (0, 0)))              # (T+2, B_pad, D)
    x_im2col = jnp.concatenate(
        [x_t[0:T], x_t[1:T + 1], x_t[2:T + 2]], axis=-1)              # (T, B_pad, 3D)
    x_im2col = bf16(x_im2col)

    # conv weight (H, D, 3) -> (3D, H) stacked along K to match the im2col order
    wconv = bf16(jnp.concatenate(
        [params["w_conv"][:, :, k].T for k in range(3)], axis=0))     # (3D, H)
    bconv = params["b_conv"].reshape(1, H).astype(jnp.float32)

    # gate-column permutation: PyTorch order [i|f|g|o] -> kernel order [i|f|o|g]
    def perm_cols(w_t):                                               # (H, 4H)
        i, f, g, o = jnp.split(w_t, 4, axis=1)
        return jnp.concatenate([i, f, o, g], axis=1)

    def perm_vec(b):                                                  # (4H,)
        i, f, g, o = jnp.split(b, 4)
        return jnp.concatenate([i, f, o, g])

    wih_f = bf16(perm_cols(params["w_ih_f"].T))                       # (H, 4H)
    whh_f = bf16(perm_cols(params["w_hh_f"].T))                       # (H, 4H)
    b_f = perm_vec(params["b_ih_f"] + params["b_hh_f"]
                   ).reshape(1, 4 * H).astype(jnp.float32)
    wih_b = bf16(perm_cols(params["w_ih_b"].T))                       # (H, 4H)
    b_b = perm_vec(params["b_ih_b"] + params["b_hh_b"]
                   ).reshape(1, 4 * H).astype(jnp.float32)
    # note: w_hh_b is not needed — the backward output at the last position is its
    # first step from zero state, so the h @ W_hh_b term vanishes exactly.

    wfc = bf16(params["w_fc"].T)                                      # (2H, C)
    bfc = params["b_fc"].reshape(1, C).astype(jnp.float32)

    kernel = functools.partial(
        _cnn_bilstm_kernel, Tc=Tc, Bb=Bb, D=D, H=H, C=C, multi_label=multi_label)

    vmem_full = pl.BlockSpec(memory_space=pltpu.MemorySpace.VMEM)     # whole array

    out = pl.pallas_call(
        kernel,
        out_shape=jax.ShapeDtypeStruct((B_pad, C), jnp.float32),
        grid=(nb, nt),
        in_specs=[
            pl.BlockSpec((Tc, Bb, 3 * D), lambda b, t: (t, b, 0)),    # streamed x
            vmem_full,                                                # wconv
            vmem_full,                                                # bconv
            vmem_full,                                                # wih_f
            vmem_full,                                                # whh_f
            vmem_full,                                                # b_f
            vmem_full,                                                # wih_b
            vmem_full,                                                # b_b
            vmem_full,                                                # wfc
            vmem_full,                                                # bfc
        ],
        out_specs=pl.BlockSpec((Bb, C), lambda b, t: (b, 0)),
        scratch_shapes=[
            pltpu.VMEM((Tc, Bb, 4 * H), jnp.bfloat16),   # hoisted gate projections
            pltpu.VMEM((Bb, H), jnp.float32),            # carried h
            pltpu.VMEM((Bb, H), jnp.float32),            # carried c
        ],
        compiler_params=pltpu.CompilerParams(
            dimension_semantics=("parallel", "arbitrary"),
            vmem_limit_bytes=_vmem_budget_bytes(Tc, Bb, D, H, C)),
    )(x_im2col, wconv, bconv, wih_f, whh_f, b_f, wih_b, b_b, wfc, bfc)
    return out[:B]


# ---------------------------------------------------------------------------
# Deterministic parameter init (shapes follow nn.Conv1d / nn.LSTM / nn.Linear)
# ---------------------------------------------------------------------------
def init_params(key, input_dim, hidden_dim, num_classes, kernel_size=3):
    H = hidden_dim
    shapes = [
        ("w_conv", (H, input_dim, kernel_size)),
        ("b_conv", (H,)),
        ("w_ih_f", (4 * H, H)),
        ("w_hh_f", (4 * H, H)),
        ("b_ih_f", (4 * H,)),
        ("b_hh_f", (4 * H,)),
        ("w_ih_b", (4 * H, H)),
        ("w_hh_b", (4 * H, H)),
        ("b_ih_b", (4 * H,)),
        ("b_hh_b", (4 * H,)),
        ("w_fc", (num_classes, 2 * H)),
        ("b_fc", (num_classes,)),
    ]
    k = 1.0 / jnp.sqrt(jnp.float32(H))
    keys = jax.random.split(key, len(shapes))
    return {name: jax.random.uniform(kk, shape, jnp.float32, -k, k)
            for kk, (name, shape) in zip(keys, shapes)}


# ---------------------------------------------------------------------------
# Pure-JAX f32 reference mirroring the PyTorch forward (full BiLSTM)
# ---------------------------------------------------------------------------
def reference_forward(x, params, hidden_dim, multi_label=False):
    B, T, D = x.shape
    H = hidden_dim
    Wc, bc = params["w_conv"], params["b_conv"]
    xp = jnp.pad(x, ((0, 0), (1, 1), (0, 0)))
    conv = (xp[:, 0:T] @ Wc[:, :, 0].T
            + xp[:, 1:T + 1] @ Wc[:, :, 1].T
            + xp[:, 2:T + 2] @ Wc[:, :, 2].T + bc)
    conv = jax.nn.relu(conv)                                          # (B, T, H)

    def run_cell(x_seq, wih, whh, b):
        def step(carry, x_t):
            h, c = carry
            gates = x_t @ wih.T + h @ whh.T + b
            i, f, g, o = jnp.split(gates, 4, axis=-1)
            i, f, o = jax.nn.sigmoid(i), jax.nn.sigmoid(f), jax.nn.sigmoid(o)
            g = jnp.tanh(g)
            c = f * c + i * g
            h = o * jnp.tanh(c)
            return (h, c), h
        h0 = jnp.zeros((B, H), jnp.float32)
        _, hs = lax.scan(step, (h0, h0), jnp.transpose(x_seq, (1, 0, 2)))
        return jnp.transpose(hs, (1, 0, 2))                           # (B, T, H)

    fwd = run_cell(conv, params["w_ih_f"], params["w_hh_f"],
                   params["b_ih_f"] + params["b_hh_f"])
    bwd = run_cell(conv[:, ::-1], params["w_ih_b"], params["w_hh_b"],
                   params["b_ih_b"] + params["b_hh_b"])[:, ::-1]
    last = jnp.concatenate([fwd[:, -1], bwd[:, -1]], axis=-1)         # (B, 2H)
    logits = last @ params["w_fc"].T + params["b_fc"]
    return jax.nn.sigmoid(logits) if multi_label else jax.nn.softmax(logits, axis=1)


if __name__ == "__main__":
    B, T, D, H, C = 2, 8, 16, 32, 4

    key = jax.random.PRNGKey(0)
    kx, kp = jax.random.split(key)
    x = jax.random.normal(kx, (B, T, D), jnp.float32)
    params = init_params(kp, D, H, C)

    out = cnn_bilstm(x, params, hidden_dim=H, num_classes=C)
    out = jax.block_until_ready(out)

    ref = reference_forward(x, params, H)
    assert out.shape == (B, C)
    assert bool(jnp.all(jnp.isfinite(out)))
    # tolerance budget for bf16 MXU operands / bf16 gate-projection scratch vs f32 ref
    assert float(jnp.max(jnp.abs(out - ref))) < 5e-2

    print("KERNEL_OK")
</pallas_src>

<mosaic_0001>
module attributes {stable_mosaic.version = 11 : i64} {
  func.func @_cnn_bilstm_kernel(%arg0: i32, %arg1: i32, %arg2: memref<8x16x48xbf16, #tpu.memory_space<vmem>>, %arg3: memref<48x32xbf16, #tpu.memory_space<vmem>>, %arg4: memref<1x32xf32, #tpu.memory_space<vmem>>, %arg5: memref<32x128xbf16, #tpu.memory_space<vmem>>, %arg6: memref<32x128xbf16, #tpu.memory_space<vmem>>, %arg7: memref<1x128xf32, #tpu.memory_space<vmem>>, %arg8: memref<32x128xbf16, #tpu.memory_space<vmem>>, %arg9: memref<1x128xf32, #tpu.memory_space<vmem>>, %arg10: memref<64x4xbf16, #tpu.memory_space<vmem>>, %arg11: memref<1x4xf32, #tpu.memory_space<vmem>>, %arg12: memref<16x4xf32, #tpu.memory_space<vmem>>, %arg13: memref<8x16x128xbf16, #tpu.memory_space<vmem>>, %arg14: memref<16x32xf32, #tpu.memory_space<vmem>>, %arg15: memref<16x32xf32, #tpu.memory_space<vmem>>) attributes {dimension_semantics = [#tpu.dimension_semantics<parallel>, #tpu.dimension_semantics<arbitrary>], iteration_bounds = array<i64: 1, 1>, scalar_prefetch = 0 : i64, scratch_operands = 3 : i64, tpu.core_type = #tpu.core_type<tc>, window_params = [{transform_indices = @transform_0, window_bounds = array<i64: 8, 16, 48>}, {pipeline_mode = #tpu.pipeline_mode<synchronous>, transform_indices = @transform_1, window_bounds = array<i64: 48, 32>}, {pipeline_mode = #tpu.pipeline_mode<synchronous>, transform_indices = @transform_2, window_bounds = array<i64: 1, 32>}, {pipeline_mode = #tpu.pipeline_mode<synchronous>, transform_indices = @transform_3, window_bounds = array<i64: 32, 128>}, {pipeline_mode = #tpu.pipeline_mode<synchronous>, transform_indices = @transform_4, window_bounds = array<i64: 32, 128>}, {pipeline_mode = #tpu.pipeline_mode<synchronous>, transform_indices = @transform_5, window_bounds = array<i64: 1, 128>}, {pipeline_mode = #tpu.pipeline_mode<synchronous>, transform_indices = @transform_6, window_bounds = array<i64: 32, 128>}, {pipeline_mode = #tpu.pipeline_mode<synchronous>, transform_indices = @transform_7, window_bounds = array<i64: 1, 128>}, {pipeline_mode = #tpu.pipeline_mode<synchronous>, transform_indices = @transform_8, window_bounds = array<i64: 64, 4>}, {pipeline_mode = #tpu.pipeline_mode<synchronous>, transform_indices = @transform_9, window_bounds = array<i64: 1, 4>}, {transform_indices = @transform_10, window_bounds = array<i64: 16, 4>}]} {
    %c0_i32 = arith.constant 0 : i32
    %0 = arith.cmpi eq, %arg1, %c0_i32 : i32
    %1 = arith.extui %0 : i1 to i32
    %c0_i32_0 = arith.constant 0 : i32
    %2 = arith.cmpi ne, %1, %c0_i32_0 : i32
    scf.if %2 {
      %cst_61 = arith.constant 0.000000e+00 : f32
      %229 = vector.broadcast %cst_61 : f32 to vector<16x32xf32>
      %c0_62 = arith.constant 0 : index
      %c0_63 = arith.constant 0 : index
      %230 = vector.load %arg14[%c0_62, %c0_63] : memref<16x32xf32, #tpu.memory_space<vmem>>, vector<16x32xf32>
      tpu.vector_store %arg14[%c0_62, %c0_63], %229 {strides = array<i32>} : memref<16x32xf32, #tpu.memory_space<vmem>>, vector<16x32xf32>,
      %cst_64 = arith.constant 0.000000e+00 : f32
      %231 = vector.broadcast %cst_64 : f32 to vector<16x32xf32>
      %c0_65 = arith.constant 0 : index
      %c0_66 = arith.constant 0 : index
      %232 = vector.load %arg15[%c0_65, %c0_66] : memref<16x32xf32, #tpu.memory_space<vmem>>, vector<16x32xf32>
      tpu.vector_store %arg15[%c0_65, %c0_66], %231 {strides = array<i32>} : memref<16x32xf32, #tpu.memory_space<vmem>>, vector<16x32xf32>,
    } else {
    }
    %c0 = arith.constant 0 : index
    %c0_1 = arith.constant 0 : index
    %c0_2 = arith.constant 0 : index
    %3 = vector.load %arg2[%c0, %c0_1, %c0_2] : memref<8x16x48xbf16, #tpu.memory_space<vmem>>, vector<8x16x48xbf16>
    %4 = vector.shape_cast %3 : vector<8x16x48xbf16> to vector<128x48xbf16>
    %c0_3 = arith.constant 0 : index
    %c0_4 = arith.constant 0 : index
    %5 = vector.load %arg3[%c0_3, %c0_4] : memref<48x32xbf16, #tpu.memory_space<vmem>>, vector<48x32xbf16>
    %cst = arith.constant dense<0.000000e+00> : vector<128x32xf32>
    %6 = tpu.matmul %4, %5, %cst {dimension_numbers = #tpu.dot_dimension_numbers<[1], [0], [0], [1], [0, 0, 1, 1], [], []>} : vector<128x48xbf16>, vector<48x32xbf16>, vector<128x32xf32> -> vector<128x32xf32>
    %c0_5 = arith.constant 0 : index
    %c0_6 = arith.constant 0 : index
    %7 = vector.load %arg4[%c0_5, %c0_6] : memref<1x32xf32, #tpu.memory_space<vmem>>, vector<1x32xf32>
    %8 = vector.broadcast %7 : vector<1x32xf32> to vector<128x32xf32>
    %9 = arith.addf %6, %8 : vector<128x32xf32>
    %cst_7 = arith.constant 0.000000e+00 : f32
    %10 = vector.broadcast %cst_7 : f32 to vector<128x32xf32>
    %11 = arith.maximumf %9, %10 : vector<128x32xf32>
    %12 = arith.truncf %11 : vector<128x32xf32> to vector<128x32xbf16>
    %13 = vector.shape_cast %12 : vector<128x32xbf16> to vector<8x16x32xbf16>
    %14 = vector.shape_cast %13 : vector<8x16x32xbf16> to vector<128x32xbf16>
    %c0_8 = arith.constant 0 : index
    %c0_9 = arith.constant 0 : index
    %15 = vector.load %arg5[%c0_8, %c0_9] : memref<32x128xbf16, #tpu.memory_space<vmem>>, vector<32x128xbf16>
    %cst_10 = arith.constant dense<0.000000e+00> : vector<128x128xf32>
    %16 = tpu.matmul %14, %15, %cst_10 {dimension_numbers = #tpu.dot_dimension_numbers<[1], [0], [0], [1], [0, 0, 1, 1], [], []>} : vector<128x32xbf16>, vector<32x128xbf16>, vector<128x128xf32> -> vector<128x128xf32>
    %17 = vector.shape_cast %16 : vector<128x128xf32> to vector<8x16x128xf32>
    %18 = arith.truncf %17 : vector<8x16x128xf32> to vector<8x16x128xbf16>
    %c0_11 = arith.constant 0 : index
    %c0_12 = arith.constant 0 : index
    %c0_13 = arith.constant 0 : index
    %19 = vector.load %arg13[%c0_11, %c0_12, %c0_13] : memref<8x16x128xbf16, #tpu.memory_space<vmem>>, vector<8x16x128xbf16>
    tpu.vector_store %arg13[%c0_11, %c0_12, %c0_13], %18 {strides = array<i32>} : memref<8x16x128xbf16, #tpu.memory_space<vmem>>, vector<8x16x128xbf16>,
    %c0_14 = arith.constant 0 : index
    %c0_15 = arith.constant 0 : index
    %20 = vector.load %arg6[%c0_14, %c0_15] : memref<32x128xbf16, #tpu.memory_space<vmem>>, vector<32x128xbf16>
    %c0_16 = arith.constant 0 : index
    %c0_17 = arith.constant 0 : index
    %21 = vector.load %arg7[%c0_16, %c0_17] : memref<1x128xf32, #tpu.memory_space<vmem>>, vector<1x128xf32>
    %c0_18 = arith.constant 0 : index
    %c0_19 = arith.constant 0 : index
    %22 = vector.load %arg14[%c0_18, %c0_19] : memref<16x32xf32, #tpu.memory_space<vmem>>, vector<16x32xf32>
    %c0_20 = arith.constant 0 : index
    %c0_21 = arith.constant 0 : index
    %23 = vector.load %arg15[%c0_20, %c0_21] : memref<16x32xf32, #tpu.memory_space<vmem>>, vector<16x32xf32>
    %c0_i32_22 = arith.constant 0 : i32
    %24 = arith.index_cast %c0_i32_22 : i32 to index
    %c0_23 = arith.constant 0 : index
    %c0_24 = arith.constant 0 : index
    %25 = vector.load %arg13[%24, %c0_23, %c0_24] : memref<8x16x128xbf16, #tpu.memory_space<vmem>>, vector<1x16x128xbf16>
    %26 = vector.shape_cast %25 : vector<1x16x128xbf16> to vector<16x128xbf16>
    %27 = arith.extf %26 : vector<16x128xbf16> to vector<16x128xf32>
    %28 = vector.broadcast %21 : vector<1x128xf32> to vector<16x128xf32>
    %29 = arith.addf %27, %28 : vector<16x128xf32>
    %30 = arith.truncf %22 : vector<16x32xf32> to vector<16x32xbf16>
    %cst_25 = arith.constant dense<0.000000e+00> : vector<16x128xf32>
    %31 = tpu.matmul %30, %20, %cst_25 {dimension_numbers = #tpu.dot_dimension_numbers<[1], [0], [0], [1], [0, 0, 1, 1], [], []>} : vector<16x32xbf16>, vector<32x128xbf16>, vector<16x128xf32> -> vector<16x128xf32>
    %32 = arith.addf %29, %31 : vector<16x128xf32>
    %33 = vector.extract_strided_slice %32 {offsets = [0, 0], sizes = [16, 96], strides = [1, 1]} : vector<16x128xf32> to vector<16x96xf32>
    %34 = arith.negf %33 : vector<16x96xf32>
    %35 = math.exp %34 : vector<16x96xf32>
    %cst_26 = arith.constant 1.000000e+00 : f32
    %36 = vector.broadcast %cst_26 : f32 to vector<16x96xf32>
    %37 = arith.addf %36, %35 : vector<16x96xf32>
    %38 = arith.divf %36, %37 : vector<16x96xf32>
    %39 = vector.extract_strided_slice %32 {offsets = [0, 96], sizes = [16, 32], strides = [1, 1]} : vector<16x128xf32> to vector<16x32xf32>
    %40 = math.tanh %39 : vector<16x32xf32>
    %41 = vector.extract_strided_slice %38 {offsets = [0, 0], sizes = [16, 32], strides = [1, 1]} : vector<16x96xf32> to vector<16x32xf32>
    %42 = vector.extract_strided_slice %38 {offsets = [0, 32], sizes = [16, 32], strides = [1, 1]} : vector<16x96xf32> to vector<16x32xf32>
    %43 = vector.extract_strided_slice %38 {offsets = [0, 64], sizes = [16, 32], strides = [1, 1]} : vector<16x96xf32> to vector<16x32xf32>
    %44 = arith.mulf %42, %23 : vector<16x32xf32>
    %45 = arith.mulf %41, %40 : vector<16x32xf32>
    %46 = arith.addf %44, %45 : vector<16x32xf32>
    %47 = math.tanh %46 : vector<16x32xf32>
    %48 = arith.mulf %43, %47 : vector<16x32xf32>
    %c1_i32 = arith.constant 1 : i32
    %49 = arith.index_cast %c1_i32 : i32 to index
    %c0_27 = arith.constant 0 : index
    %c0_28 = arith.constant 0 : index
    %50 = vector.load %arg13[%49, %c0_27, %c0_28] : memref<8x16x128xbf16, #tpu.memory_space<vmem>>, vector<1x16x128xbf16>
    %51 = vector.shape_cast %50 : vector<1x16x128xbf16> to vector<16x128xbf16>
    %52 = arith.extf %51 : vector<16x128xbf16> to vector<16x128xf32>
    %53 = vector.broadcast %21 : vector<1x128xf32> to vector<16x128xf32>
    %54 = arith.addf %52, %53 : vector<16x128xf32>
    %55 = arith.truncf %48 : vector<16x32xf32> to vector<16x32xbf16>
    %cst_29 = arith.constant dense<0.000000e+00> : vector<16x128xf32>
    %56 = tpu.matmul %55, %20, %cst_29 {dimension_numbers = #tpu.dot_dimension_numbers<[1], [0], [0], [1], [0, 0, 1, 1], [], []>} : vector<16x32xbf16>, vector<32x128xbf16>, vector<16x128xf32> -> vector<16x128xf32>
    %57 = arith.addf %54, %56 : vector<16x128xf32>
    %58 = vector.extract_strided_slice %57 {offsets = [0, 0], sizes = [16, 96], strides = [1, 1]} : vector<16x128xf32> to vector<16x96xf32>
    %59 = arith.negf %58 : vector<16x96xf32>
    %60 = math.exp %59 : vector<16x96xf32>
    %cst_30 = arith.constant 1.000000e+00 : f32
    %61 = vector.broadcast %cst_30 : f32 to vector<16x96xf32>
    %62 = arith.addf %61, %60 : vector<16x96xf32>
    %63 = arith.divf %61, %62 : vector<16x96xf32>
    %64 = vector.extract_strided_slice %57 {offsets = [0, 96], sizes = [16, 32], strides = [1, 1]} : vector<16x128xf32> to vector<16x32xf32>
    %65 = math.tanh %64 : vector<16x32xf32>
    %66 = vector.extract_strided_slice %63 {offsets = [0, 0], sizes = [16, 32], strides = [1, 1]} : vector<16x96xf32> to vector<16x32xf32>
    %67 = vector.extract_strided_slice %63 {offsets = [0, 32], sizes = [16, 32], strides = [1, 1]} : vector<16x96xf32> to vector<16x32xf32>
    %68 = vector.extract_strided_slice %63 {offsets = [0, 64], sizes = [16, 32], strides = [1, 1]} : vector<16x96xf32> to vector<16x32xf32>
    %69 = arith.mulf %67, %46 : vector<16x32xf32>
    %70 = arith.mulf %66, %65 : vector<16x32xf32>
    %71 = arith.addf %69, %70 : vector<16x32xf32>
    %72 = math.tanh %71 : vector<16x32xf32>
    %73 = arith.mulf %68, %72 : vector<16x32xf32>
    %c2_i32 = arith.constant 2 : i32
    %74 = arith.index_cast %c2_i32 : i32 to index
    %c0_31 = arith.constant 0 : index
    %c0_32 = arith.constant 0 : index
    %75 = vector.load %arg13[%74, %c0_31, %c0_32] : memref<8x16x128xbf16, #tpu.memory_space<vmem>>, vector<1x16x128xbf16>
    %76 = vector.shape_cast %75 : vector<1x16x128xbf16> to vector<16x128xbf16>
    %77 = arith.extf %76 : vector<16x128xbf16> to vector<16x128xf32>
    %78 = vector.broadcast %21 : vector<1x128xf32> to vector<16x128xf32>
    %79 = arith.addf %77, %78 : vector<16x128xf32>
    %80 = arith.truncf %73 : vector<16x32xf32> to vector<16x32xbf16>
    %cst_33 = arith.constant dense<0.000000e+00> : vector<16x128xf32>
    %81 = tpu.matmul %80, %20, %cst_33 {dimension_numbers = #tpu.dot_dimension_numbers<[1], [0], [0], [1], [0, 0, 1, 1], [], []>} : vector<16x32xbf16>, vector<32x128xbf16>, vector<16x128xf32> -> vector<16x128xf32>
    %82 = arith.addf %79, %81 : vector<16x128xf32>
    %83 = vector.extract_strided_slice %82 {offsets = [0, 0], sizes = [16, 96], strides = [1, 1]} : vector<16x128xf32> to vector<16x96xf32>
    %84 = arith.negf %83 : vector<16x96xf32>
    %85 = math.exp %84 : vector<16x96xf32>
    %cst_34 = arith.constant 1.000000e+00 : f32
    %86 = vector.broadcast %cst_34 : f32 to vector<16x96xf32>
    %87 = arith.addf %86, %85 : vector<16x96xf32>
    %88 = arith.divf %86, %87 : vector<16x96xf32>
    %89 = vector.extract_strided_slice %82 {offsets = [0, 96], sizes = [16, 32], strides = [1, 1]} : vector<16x128xf32> to vector<16x32xf32>
    %90 = math.tanh %89 : vector<16x32xf32>
    %91 = vector.extract_strided_slice %88 {offsets = [0, 0], sizes = [16, 32], strides = [1, 1]} : vector<16x96xf32> to vector<16x32xf32>
    %92 = vector.extract_strided_slice %88 {offsets = [0, 32], sizes = [16, 32], strides = [1, 1]} : vector<16x96xf32> to vector<16x32xf32>
    %93 = vector.extract_strided_slice %88 {offsets = [0, 64], sizes = [16, 32], strides = [1, 1]} : vector<16x96xf32> to vector<16x32xf32>
    %94 = arith.mulf %92, %71 : vector<16x32xf32>
    %95 = arith.mulf %91, %90 : vector<16x32xf32>
    %96 = arith.addf %94, %95 : vector<16x32xf32>
    %97 = math.tanh %96 : vector<16x32xf32>
    %98 = arith.mulf %93, %97 : vector<16x32xf32>
    %c3_i32 = arith.constant 3 : i32
    %99 = arith.index_cast %c3_i32 : i32 to index
    %c0_35 = arith.constant 0 : index
    %c0_36 = arith.constant 0 : index
    %100 = vector.load %arg13[%99, %c0_35, %c0_36] : memref<8x16x128xbf16, #tpu.memory_space<vmem>>, vector<1x16x128xbf16>
    %101 = vector.shape_cast %100 : vector<1x16x128xbf16> to vector<16x128xbf16>
    %102 = arith.extf %101 : vector<16x128xbf16> to vector<16x128xf32>
    %103 = vector.broadcast %21 : vector<1x128xf32> to vector<16x128xf32>
    %104 = arith.addf %102, %103 : vector<16x128xf32>
    %105 = arith.truncf %98 : vector<16x32xf32> to vector<16x32xbf16>
    %cst_37 = arith.constant dense<0.000000e+00> : vector<16x128xf32>
    %106 = tpu.matmul %105, %20, %cst_37 {dimension_numbers = #tpu.dot_dimension_numbers<[1], [0], [0], [1], [0, 0, 1, 1], [], []>} : vector<16x32xbf16>, vector<32x128xbf16>, vector<16x128xf32> -> vector<16x128xf32>
    %107 = arith.addf %104, %106 : vector<16x128xf32>
    %108 = vector.extract_strided_slice %107 {offsets = [0, 0], sizes = [16, 96], strides = [1, 1]} : vector<16x128xf32> to vector<16x96xf32>
    %109 = arith.negf %108 : vector<16x96xf32>
    %110 = math.exp %109 : vector<16x96xf32>
    %cst_38 = arith.constant 1.000000e+00 : f32
    %111 = vector.broadcast %cst_38 : f32 to vector<16x96xf32>
    %112 = arith.addf %111, %110 : vector<16x96xf32>
    %113 = arith.divf %111, %112 : vector<16x96xf32>
    %114 = vector.extract_strided_slice %107 {offsets = [0, 96], sizes = [16, 32], strides = [1, 1]} : vector<16x128xf32> to vector<16x32xf32>
    %115 = math.tanh %114 : vector<16x32xf32>
    %116 = vector.extract_strided_slice %113 {offsets = [0, 0], sizes = [16, 32], strides = [1, 1]} : vector<16x96xf32> to vector<16x32xf32>
    %117 = vector.extract_strided_slice %113 {offsets = [0, 32], sizes = [16, 32], strides = [1, 1]} : vector<16x96xf32> to vector<16x32xf32>
    %118 = vector.extract_strided_slice %113 {offsets = [0, 64], sizes = [16, 32], strides = [1, 1]} : vector<16x96xf32> to vector<16x32xf32>
    %119 = arith.mulf %117, %96 : vector<16x32xf32>
    %120 = arith.mulf %116, %115 : vector<16x32xf32>
    %121 = arith.addf %119, %120 : vector<16x32xf32>
    %122 = math.tanh %121 : vector<16x32xf32>
    %123 = arith.mulf %118, %122 : vector<16x32xf32>
    %c4_i32 = arith.constant 4 : i32
    %124 = arith.index_cast %c4_i32 : i32 to index
    %c0_39 = arith.constant 0 : index
    %c0_40 = arith.constant 0 : index
    %125 = vector.load %arg13[%124, %c0_39, %c0_40] : memref<8x16x128xbf16, #tpu.memory_space<vmem>>, vector<1x16x128xbf16>
    %126 = vector.shape_cast %125 : vector<1x16x128xbf16> to vector<16x128xbf16>
    %127 = arith.extf %126 : vector<16x128xbf16> to vector<16x128xf32>
    %128 = vector.broadcast %21 : vector<1x128xf32> to vector<16x128xf32>
    %129 = arith.addf %127, %128 : vector<16x128xf32>
    %130 = arith.truncf %123 : vector<16x32xf32> to vector<16x32xbf16>
    %cst_41 = arith.constant dense<0.000000e+00> : vector<16x128xf32>
    %131 = tpu.matmul %130, %20, %cst_41 {dimension_numbers = #tpu.dot_dimension_numbers<[1], [0], [0], [1], [0, 0, 1, 1], [], []>} : vector<16x32xbf16>, vector<32x128xbf16>, vector<16x128xf32> -> vector<16x128xf32>
    %132 = arith.addf %129, %131 : vector<16x128xf32>
    %133 = vector.extract_strided_slice %132 {offsets = [0, 0], sizes = [16, 96], strides = [1, 1]} : vector<16x128xf32> to vector<16x96xf32>
    %134 = arith.negf %133 : vector<16x96xf32>
    %135 = math.exp %134 : vector<16x96xf32>
    %cst_42 = arith.constant 1.000000e+00 : f32
    %136 = vector.broadcast %cst_42 : f32 to vector<16x96xf32>
    %137 = arith.addf %136, %135 : vector<16x96xf32>
    %138 = arith.divf %136, %137 : vector<16x96xf32>
    %139 = vector.extract_strided_slice %132 {offsets = [0, 96], sizes = [16, 32], strides = [1, 1]} : vector<16x128xf32> to vector<16x32xf32>
    %140 = math.tanh %139 : vector<16x32xf32>
    %141 = vector.extract_strided_slice %138 {offsets = [0, 0], sizes = [16, 32], strides = [1, 1]} : vector<16x96xf32> to vector<16x32xf32>
    %142 = vector.extract_strided_slice %138 {offsets = [0, 32], sizes = [16, 32], strides = [1, 1]} : vector<16x96xf32> to vector<16x32xf32>
    %143 = vector.extract_strided_slice %138 {offsets = [0, 64], sizes = [16, 32], strides = [1, 1]} : vector<16x96xf32> to vector<16x32xf32>
    %144 = arith.mulf %142, %121 : vector<16x32xf32>
    %145 = arith.mulf %141, %140 : vector<16x32xf32>
    %146 = arith.addf %144, %145 : vector<16x32xf32>
    %147 = math.tanh %146 : vector<16x32xf32>
    %148 = arith.mulf %143, %147 : vector<16x32xf32>
    %c5_i32 = arith.constant 5 : i32
    %149 = arith.index_cast %c5_i32 : i32 to index
    %c0_43 = arith.constant 0 : index
    %c0_44 = arith.constant 0 : index
    %150 = vector.load %arg13[%149, %c0_43, %c0_44] : memref<8x16x128xbf16, #tpu.memory_space<vmem>>, vector<1x16x128xbf16>
    %151 = vector.shape_cast %150 : vector<1x16x128xbf16> to vector<16x128xbf16>
    %152 = arith.extf %151 : vector<16x128xbf16> to vector<16x128xf32>
    %153 = vector.broadcast %21 : vector<1x128xf32> to vector<16x128xf32>
    %154 = arith.addf %152, %153 : vector<16x128xf32>
    %155 = arith.truncf %148 : vector<16x32xf32> to vector<16x32xbf16>
    %cst_45 = arith.constant dense<0.000000e+00> : vector<16x128xf32>
    %156 = tpu.matmul %155, %20, %cst_45 {dimension_numbers = #tpu.dot_dimension_numbers<[1], [0], [0], [1], [0, 0, 1, 1], [], []>} : vector<16x32xbf16>, vector<32x128xbf16>, vector<16x128xf32> -> vector<16x128xf32>
    %157 = arith.addf %154, %156 : vector<16x128xf32>
    %158 = vector.extract_strided_slice %157 {offsets = [0, 0], sizes = [16, 96], strides = [1, 1]} : vector<16x128xf32> to vector<16x96xf32>
    %159 = arith.negf %158 : vector<16x96xf32>
    %160 = math.exp %159 : vector<16x96xf32>
    %cst_46 = arith.constant 1.000000e+00 : f32
    %161 = vector.broadcast %cst_46 : f32 to vector<16x96xf32>
    %162 = arith.addf %161, %160 : vector<16x96xf32>
    %163 = arith.divf %161, %162 : vector<16x96xf32>
    %164 = vector.extract_strided_slice %157 {offsets = [0, 96], sizes = [16, 32], strides = [1, 1]} : vector<16x128xf32> to vector<16x32xf32>
    %165 = math.tanh %164 : vector<16x32xf32>
    %166 = vector.extract_strided_slice %163 {offsets = [0, 0], sizes = [16, 32], strides = [1, 1]} : vector<16x96xf32> to vector<16x32xf32>
    %167 = vector.extract_strided_slice %163 {offsets = [0, 32], sizes = [16, 32], strides = [1, 1]} : vector<16x96xf32> to vector<16x32xf32>
    %168 = vector.extract_strided_slice %163 {offsets = [0, 64], sizes = [16, 32], strides = [1, 1]} : vector<16x96xf32> to vector<16x32xf32>
    %169 = arith.mulf %167, %146 : vector<16x32xf32>
    %170 = arith.mulf %166, %165 : vector<16x32xf32>
    %171 = arith.addf %169, %170 : vector<16x32xf32>
    %172 = math.tanh %171 : vector<16x32xf32>
    %173 = arith.mulf %168, %172 : vector<16x32xf32>
    %c6_i32 = arith.constant 6 : i32
    %174 = arith.index_cast %c6_i32 : i32 to index
    %c0_47 = arith.constant 0 : index
    %c0_48 = arith.constant 0 : index
    %175 = vector.load %arg13[%174, %c0_47, %c0_48] : memref<8x16x128xbf16, #tpu.memory_space<vmem>>, vector<1x16x128xbf16>
    %176 = vector.shape_cast %175 : vector<1x16x128xbf16> to vector<16x128xbf16>
    %177 = arith.extf %176 : vector<16x128xbf16> to vector<16x128xf32>
    %178 = vector.broadcast %21 : vector<1x128xf32> to vector<16x128xf32>
    %179 = arith.addf %177, %178 : vector<16x128xf32>
    %180 = arith.truncf %173 : vector<16x32xf32> to vector<16x32xbf16>
    %cst_49 = arith.constant dense<0.000000e+00> : vector<16x128xf32>
    %181 = tpu.matmul %180, %20, %cst_49 {dimension_numbers = #tpu.dot_dimension_numbers<[1], [0], [0], [1], [0, 0, 1, 1], [], []>} : vector<16x32xbf16>, vector<32x128xbf16>, vector<16x128xf32> -> vector<16x128xf32>
    %182 = arith.addf %179, %181 : vector<16x128xf32>
    %183 = vector.extract_strided_slice %182 {offsets = [0, 0], sizes = [16, 96], strides = [1, 1]} : vector<16x128xf32> to vector<16x96xf32>
    %184 = arith.negf %183 : vector<16x96xf32>
    %185 = math.exp %184 : vector<16x96xf32>
    %cst_50 = arith.constant 1.000000e+00 : f32
    %186 = vector.broadcast %cst_50 : f32 to vector<16x96xf32>
    %187 = arith.addf %186, %185 : vector<16x96xf32>
    %188 = arith.divf %186, %187 : vector<16x96xf32>
    %189 = vector.extract_strided_slice %182 {offsets = [0, 96], sizes = [16, 32], strides = [1, 1]} : vector<16x128xf32> to vector<16x32xf32>
    %190 = math.tanh %189 : vector<16x32xf32>
    %191 = vector.extract_strided_slice %188 {offsets = [0, 0], sizes = [16, 32], strides = [1, 1]} : vector<16x96xf32> to vector<16x32xf32>
    %192 = vector.extract_strided_slice %188 {offsets = [0, 32], sizes = [16, 32], strides = [1, 1]} : vector<16x96xf32> to vector<16x32xf32>
    %193 = vector.extract_strided_slice %188 {offsets = [0, 64], sizes = [16, 32], strides = [1, 1]} : vector<16x96xf32> to vector<16x32xf32>
    %194 = arith.mulf %192, %171 : vector<16x32xf32>
    %195 = arith.mulf %191, %190 : vector<16x32xf32>
    %196 = arith.addf %194, %195 : vector<16x32xf32>
    %197 = math.tanh %196 : vector<16x32xf32>
    %198 = arith.mulf %193, %197 : vector<16x32xf32>
    %c7_i32 = arith.constant 7 : i32
    %199 = arith.index_cast %c7_i32 : i32 to index
    %c0_51 = arith.constant 0 : index
    %c0_52 = arith.constant 0 : index
    %200 = vector.load %arg13[%199, %c0_51, %c0_52] : memref<8x16x128xbf16, #tpu.memory_space<vmem>>, vector<1x16x128xbf16>
    %201 = vector.shape_cast %200 : vector<1x16x128xbf16> to vector<16x128xbf16>
    %202 = arith.extf %201 : vector<16x128xbf16> to vector<16x128xf32>
    %203 = vector.broadcast %21 : vector<1x128xf32> to vector<16x128xf32>
    %204 = arith.addf %202, %203 : vector<16x128xf32>
    %205 = arith.truncf %198 : vector<16x32xf32> to vector<16x32xbf16>
    %cst_53 = arith.constant dense<0.000000e+00> : vector<16x128xf32>
    %206 = tpu.matmul %205, %20, %cst_53 {dimension_numbers = #tpu.dot_dimension_numbers<[1], [0], [0], [1], [0, 0, 1, 1], [], []>} : vector<16x32xbf16>, vector<32x128xbf16>, vector<16x128xf32> -> vector<16x128xf32>
    %207 = arith.addf %204, %206 : vector<16x128xf32>
    %208 = vector.extract_strided_slice %207 {offsets = [0, 0], sizes = [16, 96], strides = [1, 1]} : vector<16x128xf32> to vector<16x96xf32>
    %209 = arith.negf %208 : vector<16x96xf32>
    %210 = math.exp %209 : vector<16x96xf32>
    %cst_54 = arith.constant 1.000000e+00 : f32
    %211 = vector.broadcast %cst_54 : f32 to vector<16x96xf32>
    %212 = arith.addf %211, %210 : vector<16x96xf32>
    %213 = arith.divf %211, %212 : vector<16x96xf32>
    %214 = vector.extract_strided_slice %207 {offsets = [0, 96], sizes = [16, 32], strides = [1, 1]} : vector<16x128xf32> to vector<16x32xf32>
    %215 = math.tanh %214 : vector<16x32xf32>
    %216 = vector.extract_strided_slice %213 {offsets = [0, 0], sizes = [16, 32], strides = [1, 1]} : vector<16x96xf32> to vector<16x32xf32>
    %217 = vector.extract_strided_slice %213 {offsets = [0, 32], sizes = [16, 32], strides = [1, 1]} : vector<16x96xf32> to vector<16x32xf32>
    %218 = vector.extract_strided_slice %213 {offsets = [0, 64], sizes = [16, 32], strides = [1, 1]} : vector<16x96xf32> to vector<16x32xf32>
    %219 = arith.mulf %217, %196 : vector<16x32xf32>
    %220 = arith.mulf %216, %215 : vector<16x32xf32>
    %221 = arith.addf %219, %220 : vector<16x32xf32>
    %222 = math.tanh %221 : vector<16x32xf32>
    %223 = arith.mulf %218, %222 : vector<16x32xf32>
    %c8_i32 = arith.constant 8 : i32
    %c0_55 = arith.constant 0 : index
    %c0_56 = arith.constant 0 : index
    %224 = vector.load %arg14[%c0_55, %c0_56] : memref<16x32xf32, #tpu.memory_space<vmem>>, vector<16x32xf32>
    tpu.vector_store %arg14[%c0_55, %c0_56], %223 {strides = array<i32>} : memref<16x32xf32, #tpu.memory_space<vmem>>, vector<16x32xf32>,
    %c0_57 = arith.constant 0 : index
    %c0_58 = arith.constant 0 : index
    %225 = vector.load %arg15[%c0_57, %c0_58] : memref<16x32xf32, #tpu.memory_space<vmem>>, vector<16x32xf32>
    tpu.vector_store %arg15[%c0_57, %c0_58], %221 {strides = array<i32>} : memref<16x32xf32, #tpu.memory_space<vmem>>, vector<16x32xf32>,
    %c0_i32_59 = arith.constant 0 : i32
    %226 = arith.cmpi eq, %arg1, %c0_i32_59 : i32
    %227 = arith.extui %226 : i1 to i32
    %c0_i32_60 = arith.constant 0 : i32
    %228 = arith.cmpi ne, %227, %c0_i32_60 : i32
    scf.if %228 {
      %229 = vector.extract_strided_slice %13 {offsets = [7, 0, 0], sizes = [1, 16, 32], strides = [1, 1, 1]} : vector<8x16x32xbf16> to vector<1x16x32xbf16>
      %230 = vector.shape_cast %229 : vector<1x16x32xbf16> to vector<16x32xbf16>
      %c0_61 = arith.constant 0 : index
      %c0_62 = arith.constant 0 : index
      %231 = vector.load %arg8[%c0_61, %c0_62] : memref<32x128xbf16, #tpu.memory_space<vmem>>, vector<32x128xbf16>
      %cst_63 = arith.constant dense<0.000000e+00> : vector<16x128xf32>
      %232 = tpu.matmul %230, %231, %cst_63 {dimension_numbers = #tpu.dot_dimension_numbers<[1], [0], [0], [1], [0, 0, 1, 1], [], []>} : vector<16x32xbf16>, vector<32x128xbf16>, vector<16x128xf32> -> vector<16x128xf32>
      %c0_64 = arith.constant 0 : index
      %c0_65 = arith.constant 0 : index
      %233 = vector.load %arg9[%c0_64, %c0_65] : memref<1x128xf32, #tpu.memory_space<vmem>>, vector<1x128xf32>
      %234 = vector.broadcast %233 : vector<1x128xf32> to vector<16x128xf32>
      %235 = arith.addf %232, %234 : vector<16x128xf32>
      %cst_66 = arith.constant 0.000000e+00 : f32
      %236 = vector.broadcast %cst_66 : f32 to vector<16x32xf32>
      %237 = vector.extract_strided_slice %235 {offsets = [0, 0], sizes = [16, 96], strides = [1, 1]} : vector<16x128xf32> to vector<16x96xf32>
      %238 = arith.negf %237 : vector<16x96xf32>
      %239 = math.exp %238 : vector<16x96xf32>
      %cst_67 = arith.constant 1.000000e+00 : f32
      %240 = vector.broadcast %cst_67 : f32 to vector<16x96xf32>
      %241 = arith.addf %240, %239 : vector<16x96xf32>
      %242 = arith.divf %240, %241 : vector<16x96xf32>
      %243 = vector.extract_strided_slice %235 {offsets = [0, 96], sizes = [16, 32], strides = [1, 1]} : vector<16x128xf32> to vector<16x32xf32>
      %244 = math.tanh %243 : vector<16x32xf32>
      %245 = vector.extract_strided_slice %242 {offsets = [0, 0], sizes = [16, 32], strides = [1, 1]} : vector<16x96xf32> to vector<16x32xf32>
      %246 = vector.extract_strided_slice %242 {offsets = [0, 32], sizes = [16, 32], strides = [1, 1]} : vector<16x96xf32> to vector<16x32xf32>
      %247 = vector.extract_strided_slice %242 {offsets = [0, 64], sizes = [16, 32], strides = [1, 1]} : vector<16x96xf32> to vector<16x32xf32>
      %248 = arith.mulf %246, %236 : vector<16x32xf32>
      %249 = arith.mulf %245, %244 : vector<16x32xf32>
      %250 = arith.addf %248, %249 : vector<16x32xf32>
      %251 = math.tanh %250 : vector<16x32xf32>
      %252 = arith.mulf %247, %251 : vector<16x32xf32>
      %c0_68 = arith.constant 0 : index
      %c0_69 = arith.constant 0 : index
      %253 = vector.load %arg10[%c0_68, %c0_69] : memref<64x4xbf16, #tpu.memory_space<vmem>>, vector<64x4xbf16>
      %254 = arith.truncf %223 : vector<16x32xf32> to vector<16x32xbf16>
      %255 = vector.extract_strided_slice %253 {offsets = [0, 0], sizes = [32, 4], strides = [1, 1]} : vector<64x4xbf16> to vector<32x4xbf16>
      %cst_70 = arith.constant dense<0.000000e+00> : vector<16x4xf32>
      %256 = tpu.matmul %254, %255, %cst_70 {dimension_numbers = #tpu.dot_dimension_numbers<[1], [0], [0], [1], [0, 0, 1, 1], [], []>} : vector<16x32xbf16>, vector<32x4xbf16>, vector<16x4xf32> -> vector<16x4xf32>
      %257 = arith.truncf %252 : vector<16x32xf32> to vector<16x32xbf16>
      %258 = vector.extract_strided_slice %253 {offsets = [32, 0], sizes = [32, 4], strides = [1, 1]} : vector<64x4xbf16> to vector<32x4xbf16>
      %cst_71 = arith.constant dense<0.000000e+00> : vector<16x4xf32>
      %259 = tpu.matmul %257, %258, %cst_71 {dimension_numbers = #tpu.dot_dimension_numbers<[1], [0], [0], [1], [0, 0, 1, 1], [], []>} : vector<16x32xbf16>, vector<32x4xbf16>, vector<16x4xf32> -> vector<16x4xf32>
      %260 = arith.addf %256, %259 : vector<16x4xf32>
      %c0_72 = arith.constant 0 : index
      %c0_73 = arith.constant 0 : index
      %261 = vector.load %arg11[%c0_72, %c0_73] : memref<1x4xf32, #tpu.memory_space<vmem>>, vector<1x4xf32>
      %262 = vector.broadcast %261 : vector<1x4xf32> to vector<16x4xf32>
      %263 = arith.addf %260, %262 : vector<16x4xf32>
      %cst_74 = arith.constant dense<0xFF800000> : vector<16xf32>
      %264 = vector.multi_reduction <maximumf>, %263, %cst_74 [1] : vector<16x4xf32> to vector<16xf32>
      %265 = vector.shape_cast %264 : vector<16xf32> to vector<16x1xf32>
      %266 = vector.broadcast %265 : vector<16x1xf32> to vector<16x4xf32>
      %267 = arith.subf %263, %266 : vector<16x4xf32>
      %268 = math.exp %267 : vector<16x4xf32>
      %cst_75 = arith.constant dense<0.000000e+00> : vector<16xf32>
      %269 = vector.multi_reduction <add>, %268, %cst_75 [1] : vector<16x4xf32> to vector<16xf32>
      %270 = vector.shape_cast %269 : vector<16xf32> to vector<16x1xf32>
      %271 = vector.broadcast %270 : vector<16x1xf32> to vector<16x4xf32>
      %272 = arith.divf %268, %271 : vector<16x4xf32>
      %c0_76 = arith.constant 0 : index
      %c0_77 = arith.constant 0 : index
      %273 = vector.load %arg12[%c0_76, %c0_77] : memref<16x4xf32, #tpu.memory_space<vmem>>, vector<16x4xf32>
      tpu.vector_store %arg12[%c0_76, %c0_77], %272 {strides = array<i32>} : memref<16x4xf32, #tpu.memory_space<vmem>>, vector<16x4xf32>,
    } else {
    }
    return
  }
  func.func @transform_0(%arg0: i32, %arg1: i32) -> (i32, i32, i32) {
    %c0_i32 = arith.constant 0 : i32
    %c0_i32_0 = arith.constant 0 : i32
    return %arg1, %arg0, %c0_i32 : i32, i32, i32
  }
  func.func @transform_1(%arg0: i32, %arg1: i32) -> (i32, i32) {
    %c0_i32 = arith.constant 0 : i32
    %c0_i32_0 = arith.constant 0 : i32
    %c0_i32_1 = arith.constant 0 : i32
    return %c0_i32, %c0_i32_0 : i32, i32
  }
  func.func @transform_2(%arg0: i32, %arg1: i32) -> (i32, i32) {
    %c0_i32 = arith.constant 0 : i32
    %c0_i32_0 = arith.constant 0 : i32
    %c0_i32_1 = arith.constant 0 : i32
    return %c0_i32, %c0_i32_0 : i32, i32
  }
  func.func @transform_3(%arg0: i32, %arg1: i32) -> (i32, i32) {
    %c0_i32 = arith.constant 0 : i32
    %c0_i32_0 = arith.constant 0 : i32
    %c0_i32_1 = arith.constant 0 : i32
    return %c0_i32, %c0_i32_0 : i32, i32
  }
  func.func @transform_4(%arg0: i32, %arg1: i32) -> (i32, i32) {
    %c0_i32 = arith.constant 0 : i32
    %c0_i32_0 = arith.constant 0 : i32
    %c0_i32_1 = arith.constant 0 : i32
    return %c0_i32, %c0_i32_0 : i32, i32
  }
  func.func @transform_5(%arg0: i32, %arg1: i32) -> (i32, i32) {
    %c0_i32 = arith.constant 0 : i32
    %c0_i32_0 = arith.constant 0 : i32
    %c0_i32_1 = arith.constant 0 : i32
    return %c0_i32, %c0_i32_0 : i32, i32
  }
  func.func @transform_6(%arg0: i32, %arg1: i32) -> (i32, i32) {
    %c0_i32 = arith.constant 0 : i32
    %c0_i32_0 = arith.constant 0 : i32
    %c0_i32_1 = arith.constant 0 : i32
    return %c0_i32, %c0_i32_0 : i32, i32
  }
  func.func @transform_7(%arg0: i32, %arg1: i32) -> (i32, i32) {
    %c0_i32 = arith.constant 0 : i32
    %c0_i32_0 = arith.constant 0 : i32
    %c0_i32_1 = arith.constant 0 : i32
    return %c0_i32, %c0_i32_0 : i32, i32
  }
  func.func @transform_8(%arg0: i32, %arg1: i32) -> (i32, i32) {
    %c0_i32 = arith.constant 0 : i32
    %c0_i32_0 = arith.constant 0 : i32
    %c0_i32_1 = arith.constant 0 : i32
    return %c0_i32, %c0_i32_0 : i32, i32
  }
  func.func @transform_9(%arg0: i32, %arg1: i32) -> (i32, i32) {
    %c0_i32 = arith.constant 0 : i32
    %c0_i32_0 = arith.constant 0 : i32
    %c0_i32_1 = arith.constant 0 : i32
    return %c0_i32, %c0_i32_0 : i32, i32
  }
  func.func @transform_10(%arg0: i32, %arg1: i32) -> (i32, i32) {
    %c0_i32 = arith.constant 0 : i32
    %c0_i32_0 = arith.constant 0 : i32
    return %arg0, %c0_i32 : i32, i32
  }
}

</mosaic_0001>

<llo_original>
// kernel: tpu_custom_call.1
$region0: #{tpu_custom_call.1}
  #allocation0 [shape = 'u32[]', space=smem, size = 0x4, offset = 0x4, fixed_abs, tag = 'smem constant byte address 0x4 - core index']
  #allocation1 [shape = 'u32[144,128]{1,0:T(1,128)}', space=vmem, size = 0x12000, scoped, tag = 'internal scratch']
  #allocation2 [shape = 'bf16[8,16,128]{2,1,0:T(8,128)(2,1)}', space=vmem, size = 0x8000, scoped, tag = 'scratch operand']
  #allocation3 [shape = 'f32[16,32]{1,0:T(8,128)}', space=vmem, size = 0x2000, scoped, tag = 'scratch operand']
  #allocation4 [shape = 'f32[16,32]{1,0:T(8,128)}', space=vmem, size = 0x2000, scoped, tag = 'scratch operand']
  %s0 = inlined_call_operand.vmem [shape: bf16[8,16,48], index: 0, kind: input, shape index: {}]
  %s1 = inlined_call_operand.vmem [shape: bf16[48,32], index: 1, kind: input, shape index: {}]
  %s2 = inlined_call_operand.vmem [shape: f32[1,32], index: 2, kind: input, shape index: {}]
  %s3 = inlined_call_operand.hbm [shape: bf16[32,128], index: 3, kind: input, shape index: {}]
  %s4 = inlined_call_operand.vmem [shape: bf16[32,128], index: 4, kind: input, shape index: {}]
  %s5 = inlined_call_operand.hbm [shape: f32[1,128], index: 5, kind: input, shape index: {}]
  %s6 = inlined_call_operand.hbm [shape: bf16[32,128], index: 6, kind: input, shape index: {}]
  %s7 = inlined_call_operand.vmem [shape: f32[1,128], index: 7, kind: input, shape index: {}]
  %s8 = inlined_call_operand.vmem [shape: bf16[64,4], index: 8, kind: input, shape index: {}]
  %s9 = inlined_call_operand.vmem [shape: f32[1,4], index: 9, kind: input, shape index: {}]
  %s10 = inlined_call_operand.vmem [shape: f32[16,4], index: 10, kind: output, shape index: {}]
  %s11 = sld [smem:[#allocation0]]
  $region70: #{tpu_custom_call.1} parent=0
    _
  %s13 = ssub.s32 1, %s11
  %s14 = scalar_select 0, %s13, %s11
  $region1: #{tpu_custom_call.1} parent=0
    #allocation5 [shape = 'u8[8192]{0}', space=vmem, size = 0x2000, scoped, tag = 'input window, operand 3, single buffered']
    #allocation6 [shape = 's32[1]{0}', space=sflag, size = 0x4, scoped, tag = 'scoped memory for tpu_custom_call.1']
    #allocation7 [shape = 'u8[512]{0}', space=vmem, size = 0x400, scoped, tag = 'input window, operand 5, single buffered']
    #allocation8 [shape = 's32[1]{0}', space=sflag, size = 0x4, scoped, tag = 'scoped memory for tpu_custom_call.1']
    #allocation9 [shape = 'u8[8192]{0}', space=vmem, size = 0x2000, scoped, tag = 'input window, operand 6, single buffered']
    %15 = vsyncpa [#allocation6], 0
    %16 = vsyncpa [#allocation8], 0
    // Predicated region
    $region2: #{tpu_custom_call.1} parent=1 // pred_check
      _
    $region3: #{tpu_custom_call.1} parent=1 // pred_check_branch
      %18 = sbr.rel (0) target = $region5
    $region4: #{tpu_custom_call.1} parent=1 // pred_region
      _
    $region5: #{tpu_custom_call.1} parent=1 // pred_fallthru
      _
    // Predicated region
    $region6: #{tpu_custom_call.1} parent=1 // pred_check
      _
    $region7: #{tpu_custom_call.1} parent=1 // pred_check_branch
      %20 = sbr.rel (0) target = $region9
    $region8: #{tpu_custom_call.1} parent=1 // pred_region
      _
    $region9: #{tpu_custom_call.1} parent=1 // pred_fallthru
      _
    // Predicated region
    $region10: #{tpu_custom_call.1} parent=1 // pred_check
      _
    $region11: #{tpu_custom_call.1} parent=1 // pred_check_branch
      %22 = sbr.rel (0) target = $region13
    $region12: #{tpu_custom_call.1} parent=1 // pred_region
      _
    $region13: #{tpu_custom_call.1} parent=1 // pred_fallthru
      _
    // Predicated region
    $region14: #{tpu_custom_call.1} parent=1 // pred_check
      _
    $region15: #{tpu_custom_call.1} parent=1 // pred_check_branch
      %24 = sbr.rel (0) target = $region17
    $region16: #{tpu_custom_call.1} parent=1 // pred_region
      %s26 = ssub.s32 256, 256
      %27 = vsyncadd [#allocation6], %s26
      %s28 = sshll.u32 [#allocation5], 4
      %s29 = int_to_ptr.vmem [resolvable:$true] %s28
      %34 = dma.hbm_to_vmem [thread:$0]  %s3, 256, %s29, [#allocation6], 64, 64, 4
    $region17: #{tpu_custom_call.1} parent=1 // pred_fallthru
      _
    // Predicated region
    $region18: #{tpu_custom_call.1} parent=1 // pred_check
      _
    $region19: #{tpu_custom_call.1} parent=1 // pred_check_branch
      %36 = sbr.rel (0) target = $region21
    $region20: #{tpu_custom_call.1} parent=1 // pred_region
      _
    $region21: #{tpu_custom_call.1} parent=1 // pred_fallthru
      _
    // Predicated region
    $region22: #{tpu_custom_call.1} parent=1 // pred_check
      _
    $region23: #{tpu_custom_call.1} parent=1 // pred_check_branch
      %38 = sbr.rel (0) target = $region25
    $region24: #{tpu_custom_call.1} parent=1 // pred_region
      %s40 = ssub.s32 16, 16
      %41 = vsyncadd [#allocation8], %s40
      %s43 = sshll.u32 [#allocation7], 4
      %s44 = int_to_ptr.vmem [resolvable:$true] %s43
      %46 = dma.hbm_to_vmem [thread:$0]  %s5, 16, %s44, [#allocation8]
    $region25: #{tpu_custom_call.1} parent=1 // pred_fallthru
      _
    // Predicated region
    $region26: #{tpu_custom_call.1} parent=1 // pred_check
      _
    $region27: #{tpu_custom_call.1} parent=1 // pred_check_branch
      %48 = sbr.rel (0) target = $region29
    $region28: #{tpu_custom_call.1} parent=1 // pred_region
      %s50 = ssub.s32 256, 256
      %51 = vsyncadd [#allocation8], %s50
      %s52 = sshll.u32 [#allocation9], 4
      %s53 = int_to_ptr.vmem [resolvable:$true] %s52
      %58 = dma.hbm_to_vmem [thread:$0]  %s6, 256, %s53, [#allocation8], 64, 64, 4
    $region29: #{tpu_custom_call.1} parent=1 // pred_fallthru
      _
    // Predicated region
    $region30: #{tpu_custom_call.1} parent=1 // pred_check
      _
    $region31: #{tpu_custom_call.1} parent=1 // pred_check_branch
      %60 = sbr.rel (0) target = $region33
    $region32: #{tpu_custom_call.1} parent=1 // pred_region
      _
    $region33: #{tpu_custom_call.1} parent=1 // pred_fallthru
      _
    // Predicated region
    $region34: #{tpu_custom_call.1} parent=1 // pred_check
      _
    $region35: #{tpu_custom_call.1} parent=1 // pred_check_branch
      %62 = sbr.rel (0) target = $region37
    $region36: #{tpu_custom_call.1} parent=1 // pred_region
      _
    $region37: #{tpu_custom_call.1} parent=1 // pred_fallthru
      _
    // Predicated region
    $region38: #{tpu_custom_call.1} parent=1 // pred_check
      _
    $region39: #{tpu_custom_call.1} parent=1 // pred_check_branch
      %64 = sbr.rel (0) target = $region41
    $region40: #{tpu_custom_call.1} parent=1 // pred_region
      _
    $region41: #{tpu_custom_call.1} parent=1 // pred_fallthru
      _
    // Predicated region
    $region42: #{tpu_custom_call.1} parent=1 // pred_check
      _
    $region43: #{tpu_custom_call.1} parent=1 // pred_check_branch
      %66 = sbr.rel (0) target = $region45
    $region44: #{tpu_custom_call.1} parent=1 // pred_region
      %67 = dma.done [#allocation6], 256
    $region45: #{tpu_custom_call.1} parent=1 // pred_fallthru
      _
    // Predicated region
    $region46: #{tpu_custom_call.1} parent=1 // pred_check
      _
    $region47: #{tpu_custom_call.1} parent=1 // pred_check_branch
      %69 = sbr.rel (0) target = $region49
    $region48: #{tpu_custom_call.1} parent=1 // pred_region
      %70 = dma.done [#allocation8], 16
    $region49: #{tpu_custom_call.1} parent=1 // pred_fallthru
      _
    // Predicated region
    $region50: #{tpu_custom_call.1} parent=1 // pred_check
      _
    $region51: #{tpu_custom_call.1} parent=1 // pred_check_branch
      %72 = sbr.rel (0) target = $region53
    $region52: #{tpu_custom_call.1} parent=1 // pred_region
      %73 = dma.done [#allocation8], 256
    $region53: #{tpu_custom_call.1} parent=1 // pred_fallthru
      _
    %p75 = scmp.eq.s32.totalorder 0, 0
    // Predicated region
    $region54: #{tpu_custom_call.1} parent=1 // pred_check
      %p76 = pneg %p75
    $region55: #{tpu_custom_call.1} parent=1 // pred_check_branch
      %78 = sbr.rel (%p76) target = $region57
    $region56: #{tpu_custom_call.1} parent=1 // pred_region
      %vm79 = vcmask 261120
      %80 = vst.msk [vmem:[#allocation3] sm:$0xff] %vm79, 0.0
      %81 = vst.msk [vmem:[#allocation3 + $0x8] sm:$0xff] %vm79, 0.0
      %82 = vst.msk [vmem:[#allocation4] sm:$0xff] %vm79, 0.0
      %83 = vst.msk [vmem:[#allocation4 + $0x8] sm:$0xff] %vm79, 0.0
    $region57: #{tpu_custom_call.1} parent=1 // pred_fallthru
      _
    %v84 = vld [vmem:[%s0] sm:$0xf]
    %v85 = vld [vmem:[%s0 + $0x4] sm:$0xf]
    %v86 = vld [vmem:[%s0 + $0x8] sm:$0xf]
    %v87 = vld [vmem:[%s0 + $0xc] sm:$0xf]
    %v88 = vld [vmem:[%s0 + $0x10] sm:$0xf]
    %v89 = vld [vmem:[%s0 + $0x14] sm:$0xf]
    %v90 = vld [vmem:[%s0 + $0x18] sm:$0xf]
    %v91 = vld [vmem:[%s0 + $0x1c] sm:$0xf]
    %v92 = vld [vmem:[%s0 + $0x20] sm:$0xf]
    %v93 = vld [vmem:[%s0 + $0x24] sm:$0xf]
    %v94 = vld [vmem:[%s0 + $0x28] sm:$0xf]
    %v95 = vld [vmem:[%s0 + $0x2c] sm:$0xf]
    %v96 = vld [vmem:[%s0 + $0x30] sm:$0xf]
    %v97 = vld [vmem:[%s0 + $0x34] sm:$0xf]
    %v98 = vld [vmem:[%s0 + $0x38] sm:$0xf]
    %v99 = vld [vmem:[%s0 + $0x3c] sm:$0xf]
    %v100 = vld [vmem:[%s1] sm:$0xf]
    %v101 = vld [vmem:[%s1 + $0x4] sm:$0xf]
    %v102 = vld [vmem:[%s1 + $0x8] sm:$0xf]
    %v103 = vld [vmem:[%s1 + $0xc] sm:$0xf]
    %v104 = vld [vmem:[%s1 + $0x10] sm:$0xf]
    %v105 = vld [vmem:[%s1 + $0x14] sm:$0xf]
    %v106 = vld [vmem:[%s2] sm:$0x1]
    %v108 = vlaneseq
    %v109 = vshrl.u32 %v108, 7
    %v110 = vsub.s32 0, %v109
    %v111 = vrot.slane %v106, %v110
    %v129 = vunpack.c.l.b16 %v84
    %v130 = vunpack.c.l.b16 %v85
    %v131 = vunpack.c.l.b16 %v86
    %v132 = vunpack.c.l.b16 %v87
    %v133 = vunpack.c.l.b16 %v88
    %v134 = vunpack.c.l.b16 %v89
    %v135 = vunpack.c.l.b16 %v90
    %v136 = vunpack.c.l.b16 %v91
    %v137 = vunpack.c.l.b16 %v92
    %v138 = vunpack.c.l.b16 %v93
    %v139 = vunpack.c.l.b16 %v94
    %v140 = vunpack.c.l.b16 %v95
    %v141 = vunpack.c.l.b16 %v96
    %v142 = vunpack.c.l.b16 %v97
    %v143 = vunpack.c.l.b16 %v98
    %v144 = vunpack.c.l.b16 %v99
    %v145 = vpack.c.b16 %v130, %v129
    %v146 = vpack.c.b16 %v132, %v131
    %v147 = vpack.c.b16 %v134, %v133
    %v148 = vpack.c.b16 %v136, %v135
    %v149 = vpack.c.b16 %v138, %v137
    %v150 = vpack.c.b16 %v140, %v139
    %v151 = vpack.c.b16 %v142, %v141
    %v152 = vpack.c.b16 %v144, %v143
    %v159 = vunpack.c.l.b16 %v100
    %v160 = vunpack.c.l.b16 %v101
    %v161 = vunpack.c.l.b16 %v102
    %v162 = vunpack.c.l.b16 %v103
    %v163 = vunpack.c.l.b16 %v104
    %v164 = vunpack.c.l.b16 %v105
    %v165 = vpack.c.b16 %v160, %v159
    %v166 = vpack.c.b16 %v162, %v161
    %v167 = vpack.c.b16 %v164, %v163
    %vm171 = vcmask 392192
    %v173 = vsel %vm171, %v145, 0
    %v176 = vsel %vm171, %v146, 0
    %v179 = vsel %vm171, %v147, 0
    %v182 = vsel %vm171, %v148, 0
    %v185 = vsel %vm171, %v149, 0
    %v188 = vsel %vm171, %v150, 0
    %v191 = vsel %vm171, %v151, 0
    %v194 = vsel %vm171, %v152, 0
    %196 = vmatprep.subr.bf16.mxu0 0
    %197 = vmatpush1.bf16.msra.mxu0 0
    %198 = vmatprep.subr.bf16.mxu0 0
    %199 = vmatpush1.bf16.msra.mxu0 0
    %200 = vmatprep.subr.bf16.mxu0 0
    %201 = vmatpush1.bf16.msra.mxu0 0
    %202 = vmatprep.subr.bf16.mxu0 0
    %203 = vmatpush1.bf16.msra.mxu0 0
    %204 = vmatprep.subr.bf16.mxu0 0
    %205 = vmatpush1.bf16.msra.mxu0 0
    %206 = vmatprep.subr.bf16.mxu0 0
    %207 = vmatpush1.bf16.msra.mxu0 %v167
    %208 = vmatprep.subr.bf16.mxu0 0
    %209 = vmatpush1.bf16.msra.mxu0 %v166
    %210 = vmatprep.subr.bf16.mxu0 0
    %211 = vmatpush1.bf16.msra.mxu0 %v165
    %212 = vmatprep.subr.bf16.mxu0 0
    %213 = vmatpush2.bf16.msra.mxu0 0
    %214 = vmatprep.subr.bf16.mxu0 0
    %215 = vmatpush2.bf16.msra.mxu0 0
    %216 = vmatprep.subr.bf16.mxu0 0
    %217 = vmatpush2.bf16.msra.mxu0 0
    %218 = vmatprep.subr.bf16.mxu0 0
    %219 = vmatpush2.bf16.msra.mxu0 0
    %220 = vmatprep.subr.bf16.mxu0 0
    %221 = vmatpush2.bf16.msra.mxu0 0
    %222 = vmatprep.subr.bf16.mxu0 0
    %223 = vmatpush2.bf16.msra.mxu0 0
    %224 = vmatprep.subr.bf16.mxu0 0
    %225 = vmatpush2.bf16.msra.mxu0 0
    %226 = vmatprep.subr.bf16.mxu0 0
    %227 = vmatpush2.bf16.msra.mxu0 0
    %228 = vmatprep.mubr.bf16.mxu0 0
    %229 = vmatmul.mubr.bf16.gmra.mxu0 %v173
    %v230 = vpop.f32.mrf.mxu0
    %v231 = vadd.f32 %v111, %v230
    %v232 = vpop.f32.mrf.mxu0
    %v233 = vpop.f32.mrf.mxu0
    %v234 = vadd.f32 %v111, %v233
    %v235 = vpop.f32.mrf.mxu0
    %236 = vmatprep.mubr.bf16.mxu0 0
    %237 = vmatmul.mubr.bf16.gmra.mxu0 %v176
    %v238 = vpop.f32.mrf.mxu0
    %v239 = vadd.f32 %v111, %v238
    %v240 = vpop.f32.mrf.mxu0
    %v241 = vpop.f32.mrf.mxu0
    %v242 = vadd.f32 %v111, %v241
    %v243 = vpop.f32.mrf.mxu0
    %244 = vmatprep.mubr.bf16.mxu0 0
    %245 = vmatmul.mubr.bf16.gmra.mxu0 %v179
    %v246 = vpop.f32.mrf.mxu0
    %v247 = vadd.f32 %v111, %v246
    %v248 = vpop.f32.mrf.mxu0
    %v249 = vpop.f32.mrf.mxu0
    %v250 = vadd.f32 %v111, %v249
    %v251 = vpop.f32.mrf.mxu0
    %252 = vmatprep.mubr.bf16.mxu0 0
    %253 = vmatmul.mubr.bf16.gmra.mxu0 %v182
    %v254 = vpop.f32.mrf.mxu0
    %v255 = vadd.f32 %v111, %v254
    %v256 = vpop.f32.mrf.mxu0
    %v257 = vpop.f32.mrf.mxu0
    %v258 = vadd.f32 %v111, %v257
    %v259 = vpop.f32.mrf.mxu0
    %260 = vmatprep.mubr.bf16.mxu0 0
    %261 = vmatmul.mubr.bf16.gmra.mxu0 %v185
    %v262 = vpop.f32.mrf.mxu0
    %v263 = vadd.f32 %v111, %v262
    %v264 = vpop.f32.mrf.mxu0
    %v265 = vpop.f32.mrf.mxu0
    %v266 = vadd.f32 %v111, %v265
    %v267 = vpop.f32.mrf.mxu0
    %268 = vmatprep.mubr.bf16.mxu0 0
    %269 = vmatmul.mubr.bf16.gmra.mxu0 %v188
    %v270 = vpop.f32.mrf.mxu0
    %v271 = vadd.f32 %v111, %v270
    %v272 = vpop.f32.mrf.mxu0
    %v273 = vpop.f32.mrf.mxu0
    %v274 = vadd.f32 %v111, %v273
    %v275 = vpop.f32.mrf.mxu0
    %276 = vmatprep.mubr.bf16.mxu0 0
    %277 = vmatmul.mubr.bf16.gmra.mxu0 %v191
    %v278 = vpop.f32.mrf.mxu0
    %v279 = vadd.f32 %v111, %v278
    %v280 = vpop.f32.mrf.mxu0
    %v281 = vpop.f32.mrf.mxu0
    %v282 = vadd.f32 %v111, %v281
    %v283 = vpop.f32.mrf.mxu0
    %284 = vmatprep.mubr.bf16.mxu0 0
    %285 = vmatmul.mubr.bf16.gmra.mxu0 %v194
    %v286 = vpop.f32.mrf.mxu0
    %v287 = vadd.f32 %v111, %v286
    %v288 = vpop.f32.mrf.mxu0
    %v289 = vpop.f32.mrf.mxu0
    %v290 = vadd.f32 %v111, %v289
    %v291 = vpop.f32.mrf.mxu0
    %292 = vdwg.mxu0
    %v293 = vmax.f32 %v231, 0.0
    %v294 = vmax.f32 %v234, 0.0
    %v295 = vmax.f32 %v239, 0.0
    %v296 = vmax.f32 %v242, 0.0
    %v297 = vmax.f32 %v247, 0.0
    %v298 = vmax.f32 %v250, 0.0
    %v299 = vmax.f32 %v255, 0.0
    %v300 = vmax.f32 %v258, 0.0
    %v301 = vmax.f32 %v263, 0.0
    %v302 = vmax.f32 %v266, 0.0
    %v303 = vmax.f32 %v271, 0.0
    %v304 = vmax.f32 %v274, 0.0
    %v305 = vmax.f32 %v279, 0.0
    %v306 = vmax.f32 %v282, 0.0
    %v307 = vmax.f32 %v287, 0.0
    %v308 = vmax.f32 %v290, 0.0
    %v309 = vpack.c.bf16 %v294, %v293
    %v310 = vpack.c.bf16 %v296, %v295
    %v311 = vpack.c.bf16 %v298, %v297
    %v312 = vpack.c.bf16 %v300, %v299
    %v313 = vpack.c.bf16 %v302, %v301
    %v314 = vpack.c.bf16 %v304, %v303
    %v315 = vpack.c.bf16 %v306, %v305
    %v316 = vpack.c.bf16 %v308, %v307
    %v317 = vld [vmem:[#allocation5] sm:$0xf]
    %v318 = vld [vmem:[#allocation5 + $0x4] sm:$0xf]
    %v319 = vld [vmem:[#allocation5 + $0x8] sm:$0xf]
    %v320 = vld [vmem:[#allocation5 + $0xc] sm:$0xf]
    %v325 = vunpack.c.l.b16 %v317
    %v326 = vunpack.c.l.b16 %v318
    %v327 = vunpack.c.l.b16 %v319
    %v328 = vunpack.c.l.b16 %v320
    %v329 = vpack.c.b16 %v326, %v325
    %v330 = vpack.c.b16 %v328, %v327
    %vm333 = vcmask 261120
    %v335 = vsel %vm333, %v309, 0
    %v338 = vsel %vm333, %v310, 0
    %v341 = vsel %vm333, %v311, 0
    %v344 = vsel %vm333, %v312, 0
    %v347 = vsel %vm333, %v313, 0
    %v350 = vsel %vm333, %v314, 0
    %v353 = vsel %vm333, %v315, 0
    %v356 = vsel %vm333, %v316, 0
    %358 = vmatprep.subr.bf16.mxu0 0
    %359 = vmatpush1.bf16.msra.mxu0 0
    %360 = vmatprep.subr.bf16.mxu0 0
    %361 = vmatpush1.bf16.msra.mxu0 0
    %362 = vmatprep.subr.bf16.mxu0 0
    %363 = vmatpush1.bf16.msra.mxu0 0
    %364 = vmatprep.subr.bf16.mxu0 0
    %365 = vmatpush1.bf16.msra.mxu0 0
    %366 = vmatprep.subr.bf16.mxu0 0
    %367 = vmatpush1.bf16.msra.mxu0 0
    %368 = vmatprep.subr.bf16.mxu0 0
    %369 = vmatpush1.bf16.msra.mxu0 0
    %370 = vmatprep.subr.bf16.mxu0 0
    %371 = vmatpush1.bf16.msra.mxu0 %v330
    %372 = vmatprep.subr.bf16.mxu0 0
    %373 = vmatpush1.bf16.msra.mxu0 %v329
    %374 = vmatprep.subr.bf16.mxu0 0
    %375 = vmatpush2.bf16.msra.mxu0 0
    %376 = vmatprep.subr.bf16.mxu0 0
    %377 = vmatpush2.bf16.msra.mxu0 0
    %378 = vmatprep.subr.bf16.mxu0 0
    %379 = vmatpush2.bf16.msra.mxu0 0
    %380 = vmatprep.subr.bf16.mxu0 0
    %381 = vmatpush2.bf16.msra.mxu0 0
    %382 = vmatprep.subr.bf16.mxu0 0
    %383 = vmatpush2.bf16.msra.mxu0 0
    %384 = vmatprep.subr.bf16.mxu0 0
    %385 = vmatpush2.bf16.msra.mxu0 0
    %386 = vmatprep.subr.bf16.mxu0 0
    %387 = vmatpush2.bf16.msra.mxu0 0
    %388 = vmatprep.subr.bf16.mxu0 0
    %389 = vmatpush2.bf16.msra.mxu0 0
    %390 = vmatprep.mubr.bf16.mxu0 0
    %391 = vmatmul.mubr.bf16.gmra.mxu0 %v335
    %v392 = vpop.f32.mrf.mxu0
    %v393 = vadd.f32 0.0, %v392
    %v394 = vpop.f32.mrf.mxu0
    %v395 = vpop.f32.mrf.mxu0
    %v396 = vadd.f32 0.0, %v395
    %v397 = vpop.f32.mrf.mxu0
    %398 = vmatprep.mubr.bf16.mxu0 0
    %399 = vmatmul.mubr.bf16.gmra.mxu0 %v338
    %v400 = vpop.f32.mrf.mxu0
    %v401 = vadd.f32 0.0, %v400
    %v402 = vpop.f32.mrf.mxu0
    %v403 = vpop.f32.mrf.mxu0
    %v404 = vadd.f32 0.0, %v403
    %v405 = vpop.f32.mrf.mxu0
    %406 = vmatprep.mubr.bf16.mxu0 0
    %407 = vmatmul.mubr.bf16.gmra.mxu0 %v341
    %v408 = vpop.f32.mrf.mxu0
    %v409 = vadd.f32 0.0, %v408
    %v410 = vpop.f32.mrf.mxu0
    %v411 = vpop.f32.mrf.mxu0
    %v412 = vadd.f32 0.0, %v411
    %v413 = vpop.f32.mrf.mxu0
    %414 = vmatprep.mubr.bf16.mxu0 0
    %415 = vmatmul.mubr.bf16.gmra.mxu0 %v344
    %v416 = vpop.f32.mrf.mxu0
    %v417 = vadd.f32 0.0, %v416
    %v418 = vpop.f32.mrf.mxu0
    %v419 = vpop.f32.mrf.mxu0
    %v420 = vadd.f32 0.0, %v419
    %v421 = vpop.f32.mrf.mxu0
    %422 = vmatprep.mubr.bf16.mxu0 0
    %423 = vmatmul.mubr.bf16.gmra.mxu0 %v347
    %v424 = vpop.f32.mrf.mxu0
    %v425 = vadd.f32 0.0, %v424
    %v426 = vpop.f32.mrf.mxu0
    %v427 = vpop.f32.mrf.mxu0
    %v428 = vadd.f32 0.0, %v427
    %v429 = vpop.f32.mrf.mxu0
    %430 = vmatprep.mubr.bf16.mxu0 0
    %431 = vmatmul.mubr.bf16.gmra.mxu0 %v350
    %v432 = vpop.f32.mrf.mxu0
    %v433 = vadd.f32 0.0, %v432
    %v434 = vpop.f32.mrf.mxu0
    %v435 = vpop.f32.mrf.mxu0
    %v436 = vadd.f32 0.0, %v435
    %v437 = vpop.f32.mrf.mxu0
    %438 = vmatprep.mubr.bf16.mxu0 0
    %439 = vmatmul.mubr.bf16.gmra.mxu0 %v353
    %v440 = vpop.f32.mrf.mxu0
    %v441 = vadd.f32 0.0, %v440
    %v442 = vpop.f32.mrf.mxu0
    %v443 = vpop.f32.mrf.mxu0
    %v444 = vadd.f32 0.0, %v443
    %v445 = vpop.f32.mrf.mxu0
    %446 = vmatprep.mubr.bf16.mxu0 0
    %447 = vmatmul.mubr.bf16.gmra.mxu0 %v356
    %v448 = vpop.f32.mrf.mxu0
    %v449 = vadd.f32 0.0, %v448
    %v450 = vpop.f32.mrf.mxu0
    %v451 = vpop.f32.mrf.mxu0
    %v452 = vadd.f32 0.0, %v451
    %v453 = vpop.f32.mrf.mxu0
    %454 = vdwg.mxu0
    %v455 = vpack.c.bf16 %v396, %v393
    %v456 = vpack.c.bf16 %v404, %v401
    %v457 = vpack.c.bf16 %v412, %v409
    %v458 = vpack.c.bf16 %v420, %v417
    %v459 = vpack.c.bf16 %v428, %v425
    %v460 = vpack.c.bf16 %v436, %v433
    %v461 = vpack.c.bf16 %v444, %v441
    %v462 = vpack.c.bf16 %v452, %v449
    %v471 = vunpack.c.l.b16 %v455
    %v472 = vunpack.c.h.b16 %v455
    %v473 = vunpack.c.l.b16 %v456
    %v474 = vunpack.c.h.b16 %v456
    %v475 = vunpack.c.l.b16 %v457
    %v476 = vunpack.c.h.b16 %v457
    %v477 = vunpack.c.l.b16 %v458
    %v478 = vunpack.c.h.b16 %v458
    %v479 = vunpack.c.l.b16 %v459
    %v480 = vunpack.c.h.b16 %v459
    %v481 = vunpack.c.l.b16 %v460
    %v482 = vunpack.c.h.b16 %v460
    %v483 = vunpack.c.l.b16 %v461
    %v484 = vunpack.c.h.b16 %v461
    %v485 = vunpack.c.l.b16 %v462
    %v486 = vunpack.c.h.b16 %v462
    %v487 = vpack.c.b16 %v471, %v471
    %v488 = vpack.c.b16 %v472, %v472
    %v489 = vpack.c.b16 %v473, %v473
    %v490 = vpack.c.b16 %v474, %v474
    %v491 = vpack.c.b16 %v475, %v475
    %v492 = vpack.c.b16 %v476, %v476
    %v493 = vpack.c.b16 %v477, %v477
    %v494 = vpack.c.b16 %v478, %v478
    %v495 = vpack.c.b16 %v479, %v479
    %v496 = vpack.c.b16 %v480, %v480
    %v497 = vpack.c.b16 %v481, %v481
    %v498 = vpack.c.b16 %v482, %v482
    %v499 = vpack.c.b16 %v483, %v483
    %v500 = vpack.c.b16 %v484, %v484
    %v501 = vpack.c.b16 %v485, %v485
    %v502 = vpack.c.b16 %v486, %v486
    %519 = vst [vmem:[#allocation2] sm:$0xf] %v487
    %520 = vst [vmem:[#allocation2 + $0x4] sm:$0xf] %v488
    %521 = vst [vmem:[#allocation2 + $0x8] sm:$0xf] %v489
    %522 = vst [vmem:[#allocation2 + $0xc] sm:$0xf] %v490
    %523 = vst [vmem:[#allocation2 + $0x10] sm:$0xf] %v491
    %524 = vst [vmem:[#allocation2 + $0x14] sm:$0xf] %v492
    %525 = vst [vmem:[#allocation2 + $0x18] sm:$0xf] %v493
    %526 = vst [vmem:[#allocation2 + $0x1c] sm:$0xf] %v494
    %527 = vst [vmem:[#allocation2 + $0x20] sm:$0xf] %v495
    %528 = vst [vmem:[#allocation2 + $0x24] sm:$0xf] %v496
    %529 = vst [vmem:[#allocation2 + $0x28] sm:$0xf] %v497
    %530 = vst [vmem:[#allocation2 + $0x2c] sm:$0xf] %v498
    %531 = vst [vmem:[#allocation2 + $0x30] sm:$0xf] %v499
    %532 = vst [vmem:[#allocation2 + $0x34] sm:$0xf] %v500
    %533 = vst [vmem:[#allocation2 + $0x38] sm:$0xf] %v501
    %534 = vst [vmem:[#allocation2 + $0x3c] sm:$0xf] %v502
    %v535 = vld [vmem:[%s4] sm:$0xf]
    %v536 = vld [vmem:[%s4 + $0x4] sm:$0xf]
    %v537 = vld [vmem:[%s4 + $0x8] sm:$0xf]
    %v538 = vld [vmem:[%s4 + $0xc] sm:$0xf]
    %v539 = vld [vmem:[#allocation7] sm:$0x1]
    %v540 = vld [vmem:[#allocation3] sm:$0xff]
    %v541 = vld [vmem:[#allocation3 + $0x8] sm:$0xff]
    %v542 = vld [vmem:[#allocation4] sm:$0xff]
    %v543 = vld [vmem:[#allocation4 + $0x8] sm:$0xff]
    %v544 = vld [vmem:[#allocation2] sm:$0xf]
    %v545 = vld [vmem:[#allocation2 + $0x4] sm:$0xf]
    %v546 = vunpack.c.l.bf16 %v544
    %v547 = vunpack.c.l.bf16 %v545
    %v549 = vlaneseq
    %v550 = vshrl.u32 %v549, 7
    %v551 = vsub.s32 0, %v550
    %v552 = vrot.slane %v539, %v551
    %v554 = vadd.f32 %v546, %v552
    %v555 = vadd.f32 %v547, %v552
    %v556 = vpack.c.bf16 %v541, %v540
    %v561 = vunpack.c.l.b16 %v535
    %v562 = vunpack.c.l.b16 %v536
    %v563 = vunpack.c.l.b16 %v537
    %v564 = vunpack.c.l.b16 %v538
    %v565 = vpack.c.b16 %v562, %v561
    %v566 = vpack.c.b16 %v564, %v563
    %v570 = vsel %vm333, %v556, 0
    %572 = vmatprep.subr.bf16.mxu0 0
    %573 = vmatpush1.bf16.msra.mxu0 0
    %574 = vmatprep.subr.bf16.mxu0 0
    %575 = vmatpush1.bf16.msra.mxu0 0
    %576 = vmatprep.subr.bf16.mxu0 0
    %577 = vmatpush1.bf16.msra.mxu0 0
    %578 = vmatprep.subr.bf16.mxu0 0
    %579 = vmatpush1.bf16.msra.mxu0 0
    %580 = vmatprep.subr.bf16.mxu0 0
    %581 = vmatpush1.bf16.msra.mxu0 0
    %582 = vmatprep.subr.bf16.mxu0 0
    %583 = vmatpush1.bf16.msra.mxu0 0
    %584 = vmatprep.subr.bf16.mxu0 0
    %585 = vmatpush1.bf16.msra.mxu0 %v566
    %586 = vmatprep.subr.bf16.mxu0 0
    %587 = vmatpush1.bf16.msra.mxu0 %v565
    %588 = vmatprep.subr.bf16.mxu0 0
    %589 = vmatpush2.bf16.msra.mxu0 0
    %590 = vmatprep.subr.bf16.mxu0 0
    %591 = vmatpush2.bf16.msra.mxu0 0
    %592 = vmatprep.subr.bf16.mxu0 0
    %593 = vmatpush2.bf16.msra.mxu0 0
    %594 = vmatprep.subr.bf16.mxu0 0
    %595 = vmatpush2.bf16.msra.mxu0 0
    %596 = vmatprep.subr.bf16.mxu0 0
    %597 = vmatpush2.bf16.msra.mxu0 0
    %598 = vmatprep.subr.bf16.mxu0 0
    %599 = vmatpush2.bf16.msra.mxu0 0
    %600 = vmatprep.subr.bf16.mxu0 0
    %601 = vmatpush2.bf16.msra.mxu0 0
    %602 = vmatprep.subr.bf16.mxu0 0
    %603 = vmatpush2.bf16.msra.mxu0 0
    %604 = vmatprep.mubr.bf16.mxu0 0
    %605 = vmatmul.mubr.bf16.gmra.mxu0 %v570
    %v606 = vpop.f32.mrf.mxu0
    %v607 = vadd.f32 0.0, %v606
    %v608 = vpop.f32.mrf.mxu0
    %v609 = vpop.f32.mrf.mxu0
    %v610 = vadd.f32 0.0, %v609
    %v611 = vpop.f32.mrf.mxu0
    %612 = vdwg.mxu0
    %v613 = vadd.f32 %v554, %v607
    %v614 = vadd.f32 %v555, %v610
    %v615 = vxor.u32 %v613, 2147483648
    %v616 = vxor.u32 %v614, 2147483648
    %v617 = vmul.f32 %v615, 1.442695
    %v618 = vpow.pop %v617
    %v619 = vmul.f32 %v616, 1.442695
    %v620 = vpow.pop %v619
    %v621 = vadd.f32 %v618, 1.0
    %v622 = vadd.f32 %v620, 1.0
    %v623 = vrcp.pop %v621
    %v624 = vmul.f32 1.0, %v623
    %v625 = vrcp.pop %v622
    %v626 = vmul.f32 1.0, %v625
    %v627 = vtanh.pop %v613
    %v628 = vtanh.pop %v614
    %631 = vrot.lane.b32.xlu0 %v542, 32
    %v632 = vpop.permute.xlu0 %631
    %633 = vrot.lane.b32.xlu0 %v543, 32
    %v634 = vpop.permute.xlu0 %633
    %v637 = vmul.f32 %v624, %v632
    %v638 = vmul.f32 %v626, %v634
    %641 = vrot.lane.b32.xlu0 %v627, 32
    %v642 = vpop.permute.xlu0 %641
    %643 = vrot.lane.b32.xlu0 %v628, 32
    %v644 = vpop.permute.xlu0 %643
    %v647 = vmul.f32 %v624, %v642
    %v648 = vmul.f32 %v626, %v644
    %651 = vrot.lane.b32.xlu0 %v647, 32
    %v652 = vpop.permute.xlu0 %651
    %653 = vrot.lane.b32.xlu0 %v648, 32
    %v654 = vpop.permute.xlu0 %653
    %v657 = vadd.f32 %v637, %v652
    %v658 = vadd.f32 %v638, %v654
    %v659 = vtanh.pop %v657
    %v660 = vtanh.pop %v658
    %663 = vrot.lane.b32.xlu0 %v659, 32
    %v664 = vpop.permute.xlu0 %663
    %665 = vrot.lane.b32.xlu0 %v660, 32
    %v666 = vpop.permute.xlu0 %665
    %v669 = vmul.f32 %v624, %v664
    %v670 = vmul.f32 %v626, %v666
    %s671 = scalar_lea.vmem [#allocation2], 8
    %v672 = vld [vmem:[%s671] sm:$0xf]
    %v673 = vld [vmem:[%s671 + $0x4] sm:$0xf]
    %v674 = vunpack.c.l.bf16 %v672
    %v675 = vunpack.c.l.bf16 %v673
    %v676 = vadd.f32 %v674, %v552
    %v677 = vadd.f32 %v675, %v552
    %v678 = vpack.c.bf16 %v670, %v669
    %680 = vrot.lane.b32.xlu0 %v678, 64
    %v681 = vpop.permute.xlu0 %680
    %v683 = vsel %vm333, %v681, 0
    %685 = vmatprep.subr.bf16.mxu0 0
    %686 = vmatpush1.bf16.msra.mxu0 0
    %687 = vmatprep.subr.bf16.mxu0 0
    %688 = vmatpush1.bf16.msra.mxu0 0
    %689 = vmatprep.subr.bf16.mxu0 0
    %690 = vmatpush1.bf16.msra.mxu0 0
    %691 = vmatprep.subr.bf16.mxu0 0
    %692 = vmatpush1.bf16.msra.mxu0 0
    %693 = vmatprep.subr.bf16.mxu0 0
    %694 = vmatpush1.bf16.msra.mxu0 0
    %695 = vmatprep.subr.bf16.mxu0 0
    %696 = vmatpush1.bf16.msra.mxu0 0
    %697 = vmatprep.subr.bf16.mxu0 0
    %698 = vmatpush1.bf16.msra.mxu0 %v566
    %699 = vmatprep.subr.bf16.mxu0 0
    %700 = vmatpush1.bf16.msra.mxu0 %v565
    %701 = vmatprep.subr.bf16.mxu0 0
    %702 = vmatpush2.bf16.msra.mxu0 0
    %703 = vmatprep.subr.bf16.mxu0 0
    %704 = vmatpush2.bf16.msra.mxu0 0
    %705 = vmatprep.subr.bf16.mxu0 0
    %706 = vmatpush2.bf16.msra.mxu0 0
    %707 = vmatprep.subr.bf16.mxu0 0
    %708 = vmatpush2.bf16.msra.mxu0 0
    %709 = vmatprep.subr.bf16.mxu0 0
    %710 = vmatpush2.bf16.msra.mxu0 0
    %711 = vmatprep.subr.bf16.mxu0 0
    %712 = vmatpush2.bf16.msra.mxu0 0
    %713 = vmatprep.subr.bf16.mxu0 0
    %714 = vmatpush2.bf16.msra.mxu0 0
    %715 = vmatprep.subr.bf16.mxu0 0
    %716 = vmatpush2.bf16.msra.mxu0 0
    %717 = vmatprep.mubr.bf16.mxu0 0
    %718 = vmatmul.mubr.bf16.gmra.mxu0 %v683
    %v719 = vpop.f32.mrf.mxu0
    %v720 = vadd.f32 0.0, %v719
    %v721 = vpop.f32.mrf.mxu0
    %v722 = vpop.f32.mrf.mxu0
    %v723 = vadd.f32 0.0, %v722
    %v724 = vpop.f32.mrf.mxu0
    %725 = vdwg.mxu0
    %v726 = vadd.f32 %v676, %v720
    %v727 = vadd.f32 %v677, %v723
    %v728 = vxor.u32 %v726, 2147483648
    %v729 = vxor.u32 %v727, 2147483648
    %v730 = vmul.f32 %v728, 1.442695
    %v731 = vpow.pop %v730
    %v732 = vmul.f32 %v729, 1.442695
    %v733 = vpow.pop %v732
    %v734 = vadd.f32 %v731, 1.0
    %v735 = vadd.f32 %v733, 1.0
    %v736 = vrcp.pop %v734
    %v737 = vmul.f32 1.0, %v736
    %v738 = vrcp.pop %v735
    %v739 = vmul.f32 1.0, %v738
    %v740 = vtanh.pop %v726
    %v741 = vtanh.pop %v727
    %v742 = vmul.f32 %v737, %v657
    %v743 = vmul.f32 %v739, %v658
    %746 = vrot.lane.b32.xlu0 %v740, 32
    %v747 = vpop.permute.xlu0 %746
    %748 = vrot.lane.b32.xlu0 %v741, 32
    %v749 = vpop.permute.xlu0 %748
    %v752 = vmul.f32 %v737, %v747
    %v753 = vmul.f32 %v739, %v749
    %756 = vrot.lane.b32.xlu0 %v752, 32
    %v757 = vpop.permute.xlu0 %756
    %758 = vrot.lane.b32.xlu0 %v753, 32
    %v759 = vpop.permute.xlu0 %758
    %v762 = vadd.f32 %v742, %v757
    %v763 = vadd.f32 %v743, %v759
    %v764 = vtanh.pop %v762
    %v765 = vtanh.pop %v763
    %768 = vrot.lane.b32.xlu0 %v764, 32
    %v769 = vpop.permute.xlu0 %768
    %770 = vrot.lane.b32.xlu0 %v765, 32
    %v771 = vpop.permute.xlu0 %770
    %v774 = vmul.f32 %v737, %v769
    %v775 = vmul.f32 %v739, %v771
    %s776 = scalar_lea.vmem [#allocation2], 16
    %v777 = vld [vmem:[%s776] sm:$0xf]
    %v778 = vld [vmem:[%s776 + $0x4] sm:$0xf]
    %v779 = vunpack.c.l.bf16 %v777
    %v780 = vunpack.c.l.bf16 %v778
    %v781 = vadd.f32 %v779, %v552
    %v782 = vadd.f32 %v780, %v552
    %v783 = vpack.c.bf16 %v775, %v774
    %785 = vrot.lane.b32.xlu0 %v783, 64
    %v786 = vpop.permute.xlu0 %785
    %v788 = vsel %vm333, %v786, 0
    %790 = vmatprep.subr.bf16.mxu0 0
    %791 = vmatpush1.bf16.msra.mxu0 0
    %792 = vmatprep.subr.bf16.mxu0 0
    %793 = vmatpush1.bf16.msra.mxu0 0
    %794 = vmatprep.subr.bf16.mxu0 0
    %795 = vmatpush1.bf16.msra.mxu0 0
    %796 = vmatprep.subr.bf16.mxu0 0
    %797 = vmatpush1.bf16.msra.mxu0 0
    %798 = vmatprep.subr.bf16.mxu0 0
    %799 = vmatpush1.bf16.msra.mxu0 0
    %800 = vmatprep.subr.bf16.mxu0 0
    %801 = vmatpush1.bf16.msra.mxu0 0
    %802 = vmatprep.subr.bf16.mxu0 0
    %803 = vmatpush1.bf16.msra.mxu0 %v566
    %804 = vmatprep.subr.bf16.mxu0 0
    %805 = vmatpush1.bf16.msra.mxu0 %v565
    %806 = vmatprep.subr.bf16.mxu0 0
    %807 = vmatpush2.bf16.msra.mxu0 0
    %808 = vmatprep.subr.bf16.mxu0 0
    %809 = vmatpush2.bf16.msra.mxu0 0
    %810 = vmatprep.subr.bf16.mxu0 0
    %811 = vmatpush2.bf16.msra.mxu0 0
    %812 = vmatprep.subr.bf16.mxu0 0
    %813 = vmatpush2.bf16.msra.mxu0 0
    %814 = vmatprep.subr.bf16.mxu0 0
    %815 = vmatpush2.bf16.msra.mxu0 0
    %816 = vmatprep.subr.bf16.mxu0 0
    %817 = vmatpush2.bf16.msra.mxu0 0
    %818 = vmatprep.subr.bf16.mxu0 0
    %819 = vmatpush2.bf16.msra.mxu0 0
    %820 = vmatprep.subr.bf16.mxu0 0
    %821 = vmatpush2.bf16.msra.mxu0 0
    %822 = vmatprep.mubr.bf16.mxu0 0
    %823 = vmatmul.mubr.bf16.gmra.mxu0 %v788
    %v824 = vpop.f32.mrf.mxu0
    %v825 = vadd.f32 0.0, %v824
    %v826 = vpop.f32.mrf.mxu0
    %v827 = vpop.f32.mrf.mxu0
    %v828 = vadd.f32 0.0, %v827
    %v829 = vpop.f32.mrf.mxu0
    %830 = vdwg.mxu0
    %v831 = vadd.f32 %v781, %v825
    %v832 = vadd.f32 %v782, %v828
    %v833 = vxor.u32 %v831, 2147483648
    %v834 = vxor.u32 %v832, 2147483648
    %v835 = vmul.f32 %v833, 1.442695
    %v836 = vpow.pop %v835
    %v837 = vmul.f32 %v834, 1.442695
    %v838 = vpow.pop %v837
    %v839 = vadd.f32 %v836, 1.0
    %v840 = vadd.f32 %v838, 1.0
    %v841 = vrcp.pop %v839
    %v842 = vmul.f32 1.0, %v841
    %v843 = vrcp.pop %v840
    %v844 = vmul.f32 1.0, %v843
    %v845 = vtanh.pop %v831
    %v846 = vtanh.pop %v832
    %v847 = vmul.f32 %v842, %v762
    %v848 = vmul.f32 %v844, %v763
    %851 = vrot.lane.b32.xlu0 %v845, 32
    %v852 = vpop.permute.xlu0 %851
    %853 = vrot.lane.b32.xlu0 %v846, 32
    %v854 = vpop.permute.xlu0 %853
    %v857 = vmul.f32 %v842, %v852
    %v858 = vmul.f32 %v844, %v854
    %861 = vrot.lane.b32.xlu0 %v857, 32
    %v862 = vpop.permute.xlu0 %861
    %863 = vrot.lane.b32.xlu0 %v858, 32
    %v864 = vpop.permute.xlu0 %863
    %v867 = vadd.f32 %v847, %v862
    %v868 = vadd.f32 %v848, %v864
    %v869 = vtanh.pop %v867
    %v870 = vtanh.pop %v868
    %873 = vrot.lane.b32.xlu0 %v869, 32
    %v874 = vpop.permute.xlu0 %873
    %875 = vrot.lane.b32.xlu0 %v870, 32
    %v876 = vpop.permute.xlu0 %875
    %v879 = vmul.f32 %v842, %v874
    %v880 = vmul.f32 %v844, %v876
    %s881 = scalar_lea.vmem [#allocation2], 24
    %v882 = vld [vmem:[%s881] sm:$0xf]
    %v883 = vld [vmem:[%s881 + $0x4] sm:$0xf]
    %v884 = vunpack.c.l.bf16 %v882
    %v885 = vunpack.c.l.bf16 %v883
    %v886 = vadd.f32 %v884, %v552
    %v887 = vadd.f32 %v885, %v552
    %v888 = vpack.c.bf16 %v880, %v879
    %890 = vrot.lane.b32.xlu0 %v888, 64
    %v891 = vpop.permute.xlu0 %890
    %v893 = vsel %vm333, %v891, 0
    %895 = vmatprep.subr.bf16.mxu0 0
    %896 = vmatpush1.bf16.msra.mxu0 0
    %897 = vmatprep.subr.bf16.mxu0 0
    %898 = vmatpush1.bf16.msra.mxu0 0
    %899 = vmatprep.subr.bf16.mxu0 0
    %900 = vmatpush1.bf16.msra.mxu0 0
    %901 = vmatprep.subr.bf16.mxu0 0
    %902 = vmatpush1.bf16.msra.mxu0 0
    %903 = vmatprep.subr.bf16.mxu0 0
    %904 = vmatpush1.bf16.msra.mxu0 0
    %905 = vmatprep.subr.bf16.mxu0 0
    %906 = vmatpush1.bf16.msra.mxu0 0
    %907 = vmatprep.subr.bf16.mxu0 0
    %908 = vmatpush1.bf16.msra.mxu0 %v566
    %909 = vmatprep.subr.bf16.mxu0 0
    %910 = vmatpush1.bf16.msra.mxu0 %v565
    %911 = vmatprep.subr.bf16.mxu0 0
    %912 = vmatpush2.bf16.msra.mxu0 0
    %913 = vmatprep.subr.bf16.mxu0 0
    %914 = vmatpush2.bf16.msra.mxu0 0
    %915 = vmatprep.subr.bf16.mxu0 0
    %916 = vmatpush2.bf16.msra.mxu0 0
    %917 = vmatprep.subr.bf16.mxu0 0
    %918 = vmatpush2.bf16.msra.mxu0 0
    %919 = vmatprep.subr.bf16.mxu0 0
    %920 = vmatpush2.bf16.msra.mxu0 0
    %921 = vmatprep.subr.bf16.mxu0 0
    %922 = vmatpush2.bf16.msra.mxu0 0
    %923 = vmatprep.subr.bf16.mxu0 0
    %924 = vmatpush2.bf16.msra.mxu0 0
    %925 = vmatprep.subr.bf16.mxu0 0
    %926 = vmatpush2.bf16.msra.mxu0 0
    %927 = vmatprep.mubr.bf16.mxu0 0
    %928 = vmatmul.mubr.bf16.gmra.mxu0 %v893
    %v929 = vpop.f32.mrf.mxu0
    %v930 = vadd.f32 0.0, %v929
    %v931 = vpop.f32.mrf.mxu0
    %v932 = vpop.f32.mrf.mxu0
    %v933 = vadd.f32 0.0, %v932
    %v934 = vpop.f32.mrf.mxu0
    %935 = vdwg.mxu0
    %v936 = vadd.f32 %v886, %v930
    %v937 = vadd.f32 %v887, %v933
    %v938 = vxor.u32 %v936, 2147483648
    %v939 = vxor.u32 %v937, 2147483648
    %v940 = vmul.f32 %v938, 1.442695
    %v941 = vpow.pop %v940
    %v942 = vmul.f32 %v939, 1.442695
    %v943 = vpow.pop %v942
    %v944 = vadd.f32 %v941, 1.0
    %v945 = vadd.f32 %v943, 1.0
    %v946 = vrcp.pop %v944
    %v947 = vmul.f32 1.0, %v946
    %v948 = vrcp.pop %v945
    %v949 = vmul.f32 1.0, %v948
    %v950 = vtanh.pop %v936
    %v951 = vtanh.pop %v937
    %v952 = vmul.f32 %v947, %v867
    %v953 = vmul.f32 %v949, %v868
    %956 = vrot.lane.b32.xlu0 %v950, 32
    %v957 = vpop.permute.xlu0 %956
    %958 = vrot.lane.b32.xlu0 %v951, 32
    %v959 = vpop.permute.xlu0 %958
    %v962 = vmul.f32 %v947, %v957
    %v963 = vmul.f32 %v949, %v959
    %966 = vrot.lane.b32.xlu0 %v962, 32
    %v967 = vpop.permute.xlu0 %966
    %968 = vrot.lane.b32.xlu0 %v963, 32
    %v969 = vpop.permute.xlu0 %968
    %v972 = vadd.f32 %v952, %v967
    %v973 = vadd.f32 %v953, %v969
    %v974 = vtanh.pop %v972
    %v975 = vtanh.pop %v973
    %978 = vrot.lane.b32.xlu0 %v974, 32
    %v979 = vpop.permute.xlu0 %978
    %980 = vrot.lane.b32.xlu0 %v975, 32
    %v981 = vpop.permute.xlu0 %980
    %v984 = vmul.f32 %v947, %v979
    %v985 = vmul.f32 %v949, %v981
    %s986 = scalar_lea.vmem [#allocation2], 32
    %v987 = vld [vmem:[%s986] sm:$0xf]
    %v988 = vld [vmem:[%s986 + $0x4] sm:$0xf]
    %v989 = vunpack.c.l.bf16 %v987
    %v990 = vunpack.c.l.bf16 %v988
    %v991 = vadd.f32 %v989, %v552
    %v992 = vadd.f32 %v990, %v552
    %v993 = vpack.c.bf16 %v985, %v984
    %995 = vrot.lane.b32.xlu0 %v993, 64
    %v996 = vpop.permute.xlu0 %995
    %v998 = vsel %vm333, %v996, 0
    %1000 = vmatprep.subr.bf16.mxu0 0
    %1001 = vmatpush1.bf16.msra.mxu0 0
    %1002 = vmatprep.subr.bf16.mxu0 0
    %1003 = vmatpush1.bf16.msra.mxu0 0
    %1004 = vmatprep.subr.bf16.mxu0 0
    %1005 = vmatpush1.bf16.msra.mxu0 0
    %1006 = vmatprep.subr.bf16.mxu0 0
    %1007 = vmatpush1.bf16.msra.mxu0 0
    %1008 = vmatprep.subr.bf16.mxu0 0
    %1009 = vmatpush1.bf16.msra.mxu0 0
    %1010 = vmatprep.subr.bf16.mxu0 0
    %1011 = vmatpush1.bf16.msra.mxu0 0
    %1012 = vmatprep.subr.bf16.mxu0 0
    %1013 = vmatpush1.bf16.msra.mxu0 %v566
    %1014 = vmatprep.subr.bf16.mxu0 0
    %1015 = vmatpush1.bf16.msra.mxu0 %v565
    %1016 = vmatprep.subr.bf16.mxu0 0
    %1017 = vmatpush2.bf16.msra.mxu0 0
    %1018 = vmatprep.subr.bf16.mxu0 0
    %1019 = vmatpush2.bf16.msra.mxu0 0
    %1020 = vmatprep.subr.bf16.mxu0 0
    %1021 = vmatpush2.bf16.msra.mxu0 0
    %1022 = vmatprep.subr.bf16.mxu0 0
    %1023 = vmatpush2.bf16.msra.mxu0 0
    %1024 = vmatprep.subr.bf16.mxu0 0
    %1025 = vmatpush2.bf16.msra.mxu0 0
    %1026 = vmatprep.subr.bf16.mxu0 0
    %1027 = vmatpush2.bf16.msra.mxu0 0
    %1028 = vmatprep.subr.bf16.mxu0 0
    %1029 = vmatpush2.bf16.msra.mxu0 0
    %1030 = vmatprep.subr.bf16.mxu0 0
    %1031 = vmatpush2.bf16.msra.mxu0 0
    %1032 = vmatprep.mubr.bf16.mxu0 0
    %1033 = vmatmul.mubr.bf16.gmra.mxu0 %v998
    %v1034 = vpop.f32.mrf.mxu0
    %v1035 = vadd.f32 0.0, %v1034
    %v1036 = vpop.f32.mrf.mxu0
    %v1037 = vpop.f32.mrf.mxu0
    %v1038 = vadd.f32 0.0, %v1037
    %v1039 = vpop.f32.mrf.mxu0
    %1040 = vdwg.mxu0
    %v1041 = vadd.f32 %v991, %v1035
    %v1042 = vadd.f32 %v992, %v1038
    %v1043 = vxor.u32 %v1041, 2147483648
    %v1044 = vxor.u32 %v1042, 2147483648
    %v1045 = vmul.f32 %v1043, 1.442695
    %v1046 = vpow.pop %v1045
    %v1047 = vmul.f32 %v1044, 1.442695
    %v1048 = vpow.pop %v1047
    %v1049 = vadd.f32 %v1046, 1.0
    %v1050 = vadd.f32 %v1048, 1.0
    %v1051 = vrcp.pop %v1049
    %v1052 = vmul.f32 1.0, %v1051
    %v1053 = vrcp.pop %v1050
    %v1054 = vmul.f32 1.0, %v1053
    %v1055 = vtanh.pop %v1041
    %v1056 = vtanh.pop %v1042
    %v1057 = vmul.f32 %v1052, %v972
    %v1058 = vmul.f32 %v1054, %v973
    %1061 = vrot.lane.b32.xlu0 %v1055, 32
    %v1062 = vpop.permute.xlu0 %1061
    %1063 = vrot.lane.b32.xlu0 %v1056, 32
    %v1064 = vpop.permute.xlu0 %1063
    %v1067 = vmul.f32 %v1052, %v1062
    %v1068 = vmul.f32 %v1054, %v1064
    %1071 = vrot.lane.b32.xlu0 %v1067, 32
    %v1072 = vpop.permute.xlu0 %1071
    %1073 = vrot.lane.b32.xlu0 %v1068, 32
    %v1074 = vpop.permute.xlu0 %1073
    %v1077 = vadd.f32 %v1057, %v1072
    %v1078 = vadd.f32 %v1058, %v1074
    %v1079 = vtanh.pop %v1077
    %v1080 = vtanh.pop %v1078
    %1083 = vrot.lane.b32.xlu0 %v1079, 32
    %v1084 = vpop.permute.xlu0 %1083
    %1085 = vrot.lane.b32.xlu0 %v1080, 32
    %v1086 = vpop.permute.xlu0 %1085
    %v1089 = vmul.f32 %v1052, %v1084
    %v1090 = vmul.f32 %v1054, %v1086
    %s1091 = scalar_lea.vmem [#allocation2], 40
    %v1092 = vld [vmem:[%s1091] sm:$0xf]
    %v1093 = vld [vmem:[%s1091 + $0x4] sm:$0xf]
    %v1094 = vunpack.c.l.bf16 %v1092
    %v1095 = vunpack.c.l.bf16 %v1093
    %v1096 = vadd.f32 %v1094, %v552
    %v1097 = vadd.f32 %v1095, %v552
    %v1098 = vpack.c.bf16 %v1090, %v1089
    %1100 = vrot.lane.b32.xlu0 %v1098, 64
    %v1101 = vpop.permute.xlu0 %1100
    %v1103 = vsel %vm333, %v1101, 0
    %1105 = vmatprep.subr.bf16.mxu0 0
    %1106 = vmatpush1.bf16.msra.mxu0 0
    %1107 = vmatprep.subr.bf16.mxu0 0
    %1108 = vmatpush1.bf16.msra.mxu0 0
    %1109 = vmatprep.subr.bf16.mxu0 0
    %1110 = vmatpush1.bf16.msra.mxu0 0
    %1111 = vmatprep.subr.bf16.mxu0 0
    %1112 = vmatpush1.bf16.msra.mxu0 0
    %1113 = vmatprep.subr.bf16.mxu0 0
    %1114 = vmatpush1.bf16.msra.mxu0 0
    %1115 = vmatprep.subr.bf16.mxu0 0
    %1116 = vmatpush1.bf16.msra.mxu0 0
    %1117 = vmatprep.subr.bf16.mxu0 0
    %1118 = vmatpush1.bf16.msra.mxu0 %v566
    %1119 = vmatprep.subr.bf16.mxu0 0
    %1120 = vmatpush1.bf16.msra.mxu0 %v565
    %1121 = vmatprep.subr.bf16.mxu0 0
    %1122 = vmatpush2.bf16.msra.mxu0 0
    %1123 = vmatprep.subr.bf16.mxu0 0
    %1124 = vmatpush2.bf16.msra.mxu0 0
    %1125 = vmatprep.subr.bf16.mxu0 0
    %1126 = vmatpush2.bf16.msra.mxu0 0
    %1127 = vmatprep.subr.bf16.mxu0 0
    %1128 = vmatpush2.bf16.msra.mxu0 0
    %1129 = vmatprep.subr.bf16.mxu0 0
    %1130 = vmatpush2.bf16.msra.mxu0 0
    %1131 = vmatprep.subr.bf16.mxu0 0
    %1132 = vmatpush2.bf16.msra.mxu0 0
    %1133 = vmatprep.subr.bf16.mxu0 0
    %1134 = vmatpush2.bf16.msra.mxu0 0
    %1135 = vmatprep.subr.bf16.mxu0 0
    %1136 = vmatpush2.bf16.msra.mxu0 0
    %1137 = vmatprep.mubr.bf16.mxu0 0
    %1138 = vmatmul.mubr.bf16.gmra.mxu0 %v1103
    %v1139 = vpop.f32.mrf.mxu0
    %v1140 = vadd.f32 0.0, %v1139
    %v1141 = vpop.f32.mrf.mxu0
    %v1142 = vpop.f32.mrf.mxu0
    %v1143 = vadd.f32 0.0, %v1142
    %v1144 = vpop.f32.mrf.mxu0
    %1145 = vdwg.mxu0
    %v1146 = vadd.f32 %v1096, %v1140
    %v1147 = vadd.f32 %v1097, %v1143
    %v1148 = vxor.u32 %v1146, 2147483648
    %v1149 = vxor.u32 %v1147, 2147483648
    %v1150 = vmul.f32 %v1148, 1.442695
    %v1151 = vpow.pop %v1150
    %v1152 = vmul.f32 %v1149, 1.442695
    %v1153 = vpow.pop %v1152
    %v1154 = vadd.f32 %v1151, 1.0
    %v1155 = vadd.f32 %v1153, 1.0
    %v1156 = vrcp.pop %v1154
    %v1157 = vmul.f32 1.0, %v1156
    %v1158 = vrcp.pop %v1155
    %v1159 = vmul.f32 1.0, %v1158
    %v1160 = vtanh.pop %v1146
    %v1161 = vtanh.pop %v1147
    %v1162 = vmul.f32 %v1157, %v1077
    %v1163 = vmul.f32 %v1159, %v1078
    %1166 = vrot.lane.b32.xlu0 %v1160, 32
    %v1167 = vpop.permute.xlu0 %1166
    %1168 = vrot.lane.b32.xlu0 %v1161, 32
    %v1169 = vpop.permute.xlu0 %1168
    %v1172 = vmul.f32 %v1157, %v1167
    %v1173 = vmul.f32 %v1159, %v1169
    %1176 = vrot.lane.b32.xlu0 %v1172, 32
    %v1177 = vpop.permute.xlu0 %1176
    %1178 = vrot.lane.b32.xlu0 %v1173, 32
    %v1179 = vpop.permute.xlu0 %1178
    %v1182 = vadd.f32 %v1162, %v1177
    %v1183 = vadd.f32 %v1163, %v1179
    %v1184 = vtanh.pop %v1182
    %v1185 = vtanh.pop %v1183
    %1188 = vrot.lane.b32.xlu0 %v1184, 32
    %v1189 = vpop.permute.xlu0 %1188
    %1190 = vrot.lane.b32.xlu0 %v1185, 32
    %v1191 = vpop.permute.xlu0 %1190
    %v1194 = vmul.f32 %v1157, %v1189
    %v1195 = vmul.f32 %v1159, %v1191
    %s1196 = scalar_lea.vmem [#allocation2], 48
    %v1197 = vld [vmem:[%s1196] sm:$0xf]
    %v1198 = vld [vmem:[%s1196 + $0x4] sm:$0xf]
    %v1199 = vunpack.c.l.bf16 %v1197
    %v1200 = vunpack.c.l.bf16 %v1198
    %v1201 = vadd.f32 %v1199, %v552
    %v1202 = vadd.f32 %v1200, %v552
    %v1203 = vpack.c.bf16 %v1195, %v1194
    %1205 = vrot.lane.b32.xlu0 %v1203, 64
    %v1206 = vpop.permute.xlu0 %1205
    %v1208 = vsel %vm333, %v1206, 0
    %1210 = vmatprep.subr.bf16.mxu0 0
    %1211 = vmatpush1.bf16.msra.mxu0 0
    %1212 = vmatprep.subr.bf16.mxu0 0
    %1213 = vmatpush1.bf16.msra.mxu0 0
    %1214 = vmatprep.subr.bf16.mxu0 0
    %1215 = vmatpush1.bf16.msra.mxu0 0
    %1216 = vmatprep.subr.bf16.mxu0 0
    %1217 = vmatpush1.bf16.msra.mxu0 0
    %1218 = vmatprep.subr.bf16.mxu0 0
    %1219 = vmatpush1.bf16.msra.mxu0 0
    %1220 = vmatprep.subr.bf16.mxu0 0
    %1221 = vmatpush1.bf16.msra.mxu0 0
    %1222 = vmatprep.subr.bf16.mxu0 0
    %1223 = vmatpush1.bf16.msra.mxu0 %v566
    %1224 = vmatprep.subr.bf16.mxu0 0
    %1225 = vmatpush1.bf16.msra.mxu0 %v565
    %1226 = vmatprep.subr.bf16.mxu0 0
    %1227 = vmatpush2.bf16.msra.mxu0 0
    %1228 = vmatprep.subr.bf16.mxu0 0
    %1229 = vmatpush2.bf16.msra.mxu0 0
    %1230 = vmatprep.subr.bf16.mxu0 0
    %1231 = vmatpush2.bf16.msra.mxu0 0
    %1232 = vmatprep.subr.bf16.mxu0 0
    %1233 = vmatpush2.bf16.msra.mxu0 0
    %1234 = vmatprep.subr.bf16.mxu0 0
    %1235 = vmatpush2.bf16.msra.mxu0 0
    %1236 = vmatprep.subr.bf16.mxu0 0
    %1237 = vmatpush2.bf16.msra.mxu0 0
    %1238 = vmatprep.subr.bf16.mxu0 0
    %1239 = vmatpush2.bf16.msra.mxu0 0
    %1240 = vmatprep.subr.bf16.mxu0 0
    %1241 = vmatpush2.bf16.msra.mxu0 0
    %1242 = vmatprep.mubr.bf16.mxu0 0
    %1243 = vmatmul.mubr.bf16.gmra.mxu0 %v1208
    %v1244 = vpop.f32.mrf.mxu0
    %v1245 = vadd.f32 0.0, %v1244
    %v1246 = vpop.f32.mrf.mxu0
    %v1247 = vpop.f32.mrf.mxu0
    %v1248 = vadd.f32 0.0, %v1247
    %v1249 = vpop.f32.mrf.mxu0
    %1250 = vdwg.mxu0
    %v1251 = vadd.f32 %v1201, %v1245
    %v1252 = vadd.f32 %v1202, %v1248
    %v1253 = vxor.u32 %v1251, 2147483648
    %v1254 = vxor.u32 %v1252, 2147483648
    %v1255 = vmul.f32 %v1253, 1.442695
    %v1256 = vpow.pop %v1255
    %v1257 = vmul.f32 %v1254, 1.442695
    %v1258 = vpow.pop %v1257
    %v1259 = vadd.f32 %v1256, 1.0
    %v1260 = vadd.f32 %v1258, 1.0
    %v1261 = vrcp.pop %v1259
    %v1262 = vmul.f32 1.0, %v1261
    %v1263 = vrcp.pop %v1260
    %v1264 = vmul.f32 1.0, %v1263
    %v1265 = vtanh.pop %v1251
    %v1266 = vtanh.pop %v1252
    %v1267 = vmul.f32 %v1262, %v1182
    %v1268 = vmul.f32 %v1264, %v1183
    %1271 = vrot.lane.b32.xlu0 %v1265, 32
    %v1272 = vpop.permute.xlu0 %1271
    %1273 = vrot.lane.b32.xlu0 %v1266, 32
    %v1274 = vpop.permute.xlu0 %1273
    %v1277 = vmul.f32 %v1262, %v1272
    %v1278 = vmul.f32 %v1264, %v1274
    %1281 = vrot.lane.b32.xlu0 %v1277, 32
    %v1282 = vpop.permute.xlu0 %1281
    %1283 = vrot.lane.b32.xlu0 %v1278, 32
    %v1284 = vpop.permute.xlu0 %1283
    %v1287 = vadd.f32 %v1267, %v1282
    %v1288 = vadd.f32 %v1268, %v1284
    %v1289 = vtanh.pop %v1287
    %v1290 = vtanh.pop %v1288
    %1293 = vrot.lane.b32.xlu0 %v1289, 32
    %v1294 = vpop.permute.xlu0 %1293
    %1295 = vrot.lane.b32.xlu0 %v1290, 32
    %v1296 = vpop.permute.xlu0 %1295
    %v1299 = vmul.f32 %v1262, %v1294
    %v1300 = vmul.f32 %v1264, %v1296
    %s1301 = scalar_lea.vmem [#allocation2], 56
    %v1302 = vld [vmem:[%s1301] sm:$0xf]
    %v1303 = vld [vmem:[%s1301 + $0x4] sm:$0xf]
    %v1304 = vunpack.c.l.bf16 %v1302
    %v1305 = vunpack.c.l.bf16 %v1303
    %v1306 = vadd.f32 %v1304, %v552
    %v1307 = vadd.f32 %v1305, %v552
    %v1308 = vpack.c.bf16 %v1300, %v1299
    %1310 = vrot.lane.b32.xlu0 %v1308, 64
    %v1311 = vpop.permute.xlu0 %1310
    %v1313 = vsel %vm333, %v1311, 0
    %1315 = vmatprep.subr.bf16.mxu0 0
    %1316 = vmatpush1.bf16.msra.mxu0 0
    %1317 = vmatprep.subr.bf16.mxu0 0
    %1318 = vmatpush1.bf16.msra.mxu0 0
    %1319 = vmatprep.subr.bf16.mxu0 0
    %1320 = vmatpush1.bf16.msra.mxu0 0
    %1321 = vmatprep.subr.bf16.mxu0 0
    %1322 = vmatpush1.bf16.msra.mxu0 0
    %1323 = vmatprep.subr.bf16.mxu0 0
    %1324 = vmatpush1.bf16.msra.mxu0 0
    %1325 = vmatprep.subr.bf16.mxu0 0
    %1326 = vmatpush1.bf16.msra.mxu0 0
    %1327 = vmatprep.subr.bf16.mxu0 0
    %1328 = vmatpush1.bf16.msra.mxu0 %v566
    %1329 = vmatprep.subr.bf16.mxu0 0
    %1330 = vmatpush1.bf16.msra.mxu0 %v565
    %1331 = vmatprep.subr.bf16.mxu0 0
    %1332 = vmatpush2.bf16.msra.mxu0 0
    %1333 = vmatprep.subr.bf16.mxu0 0
    %1334 = vmatpush2.bf16.msra.mxu0 0
    %1335 = vmatprep.subr.bf16.mxu0 0
    %1336 = vmatpush2.bf16.msra.mxu0 0
    %1337 = vmatprep.subr.bf16.mxu0 0
    %1338 = vmatpush2.bf16.msra.mxu0 0
    %1339 = vmatprep.subr.bf16.mxu0 0
    %1340 = vmatpush2.bf16.msra.mxu0 0
    %1341 = vmatprep.subr.bf16.mxu0 0
    %1342 = vmatpush2.bf16.msra.mxu0 0
    %1343 = vmatprep.subr.bf16.mxu0 0
    %1344 = vmatpush2.bf16.msra.mxu0 0
    %1345 = vmatprep.subr.bf16.mxu0 0
    %1346 = vmatpush2.bf16.msra.mxu0 0
    %1347 = vmatprep.mubr.bf16.mxu0 0
    %1348 = vmatmul.mubr.bf16.gmra.mxu0 %v1313
    %v1349 = vpop.f32.mrf.mxu0
    %v1350 = vadd.f32 0.0, %v1349
    %v1351 = vpop.f32.mrf.mxu0
    %v1352 = vpop.f32.mrf.mxu0
    %v1353 = vadd.f32 0.0, %v1352
    %v1354 = vpop.f32.mrf.mxu0
    %1355 = vdwg.mxu0
    %v1356 = vadd.f32 %v1306, %v1350
    %v1357 = vadd.f32 %v1307, %v1353
    %v1358 = vxor.u32 %v1356, 2147483648
    %v1359 = vxor.u32 %v1357, 2147483648
    %v1360 = vmul.f32 %v1358, 1.442695
    %v1361 = vpow.pop %v1360
    %v1362 = vmul.f32 %v1359, 1.442695
    %v1363 = vpow.pop %v1362
    %v1364 = vadd.f32 %v1361, 1.0
    %v1365 = vadd.f32 %v1363, 1.0
    %v1366 = vrcp.pop %v1364
    %v1367 = vmul.f32 1.0, %v1366
    %v1368 = vrcp.pop %v1365
    %v1369 = vmul.f32 1.0, %v1368
    %v1370 = vtanh.pop %v1356
    %v1371 = vtanh.pop %v1357
    %v1372 = vmul.f32 %v1367, %v1287
    %v1373 = vmul.f32 %v1369, %v1288
    %1376 = vrot.lane.b32.xlu0 %v1370, 32
    %v1377 = vpop.permute.xlu0 %1376
    %1378 = vrot.lane.b32.xlu0 %v1371, 32
    %v1379 = vpop.permute.xlu0 %1378
    %v1382 = vmul.f32 %v1367, %v1377
    %v1383 = vmul.f32 %v1369, %v1379
    %1386 = vrot.lane.b32.xlu0 %v1382, 32
    %v1387 = vpop.permute.xlu0 %1386
    %1388 = vrot.lane.b32.xlu0 %v1383, 32
    %v1389 = vpop.permute.xlu0 %1388
    %v1392 = vadd.f32 %v1372, %v1387
    %v1393 = vadd.f32 %v1373, %v1389
    %v1394 = vtanh.pop %v1392
    %v1395 = vtanh.pop %v1393
    %1398 = vrot.lane.b32.xlu0 %v1394, 32
    %v1399 = vpop.permute.xlu0 %1398
    %1400 = vrot.lane.b32.xlu0 %v1395, 32
    %v1401 = vpop.permute.xlu0 %1400
    %v1404 = vmul.f32 %v1367, %v1399
    %v1405 = vmul.f32 %v1369, %v1401
    %1408 = vrot.lane.b32.xlu0 %v1404, 64
    %v1409 = vpop.permute.xlu0 %1408
    %1410 = vrot.lane.b32.xlu0 %v1405, 64
    %v1411 = vpop.permute.xlu0 %1410
    %1414 = vst.msk [vmem:[#allocation3] sm:$0xff] %vm333, %v1409
    %1415 = vst.msk [vmem:[#allocation3 + $0x8] sm:$0xff] %vm333, %v1411
    %1418 = vrot.lane.b32.xlu0 %v1392, 96
    %v1419 = vpop.permute.xlu0 %1418
    %1420 = vrot.lane.b32.xlu0 %v1393, 96
    %v1421 = vpop.permute.xlu0 %1420
    %1424 = vst.msk [vmem:[#allocation4] sm:$0xff] %vm333, %v1419
    %1425 = vst.msk [vmem:[#allocation4 + $0x8] sm:$0xff] %vm333, %v1421
    // Predicated region
    $region58: #{tpu_custom_call.1} parent=1 // pred_check
      %p1426 = pneg %p75
    $region59: #{tpu_custom_call.1} parent=1 // pred_check_branch
      %1428 = sbr.rel (%p1426) target = $region61
    $region60: #{tpu_custom_call.1} parent=1 // pred_region
      %v1429 = vld [vmem:[#allocation9] sm:$0xf]
      %v1430 = vld [vmem:[#allocation9 + $0x4] sm:$0xf]
      %v1431 = vld [vmem:[#allocation9 + $0x8] sm:$0xf]
      %v1432 = vld [vmem:[#allocation9 + $0xc] sm:$0xf]
      %v1433 = vld [vmem:[%s7] sm:$0x1]
      %v1435 = vlaneseq
      %v1436 = vshrl.u32 %v1435, 7
      %v1437 = vsub.s32 0, %v1436
      %v1438 = vrot.slane %v1433, %v1437
      %v1444 = vunpack.c.l.b16 %v1429
      %v1445 = vunpack.c.l.b16 %v1430
      %v1446 = vunpack.c.l.b16 %v1431
      %v1447 = vunpack.c.l.b16 %v1432
      %v1448 = vpack.c.b16 %v1445, %v1444
      %v1449 = vpack.c.b16 %v1447, %v1446
      %1452 = vmatprep.subr.bf16.mxu0 0
      %1453 = vmatpush1.bf16.msra.mxu0 0
      %1454 = vmatprep.subr.bf16.mxu0 0
      %1455 = vmatpush1.bf16.msra.mxu0 0
      %1456 = vmatprep.subr.bf16.mxu0 0
      %1457 = vmatpush1.bf16.msra.mxu0 0
      %1458 = vmatprep.subr.bf16.mxu0 0
      %1459 = vmatpush1.bf16.msra.mxu0 0
      %1460 = vmatprep.subr.bf16.mxu0 0
      %1461 = vmatpush1.bf16.msra.mxu0 0
      %1462 = vmatprep.subr.bf16.mxu0 0
      %1463 = vmatpush1.bf16.msra.mxu0 0
      %1464 = vmatprep.subr.bf16.mxu0 0
      %1465 = vmatpush1.bf16.msra.mxu0 %v1449
      %1466 = vmatprep.subr.bf16.mxu0 0
      %1467 = vmatpush1.bf16.msra.mxu0 %v1448
      %1468 = vmatprep.subr.bf16.mxu0 0
      %1469 = vmatpush2.bf16.msra.mxu0 0
      %1470 = vmatprep.subr.bf16.mxu0 0
      %1471 = vmatpush2.bf16.msra.mxu0 0
      %1472 = vmatprep.subr.bf16.mxu0 0
      %1473 = vmatpush2.bf16.msra.mxu0 0
      %1474 = vmatprep.subr.bf16.mxu0 0
      %1475 = vmatpush2.bf16.msra.mxu0 0
      %1476 = vmatprep.subr.bf16.mxu0 0
      %1477 = vmatpush2.bf16.msra.mxu0 0
      %1478 = vmatprep.subr.bf16.mxu0 0
      %1479 = vmatpush2.bf16.msra.mxu0 0
      %1480 = vmatprep.subr.bf16.mxu0 0
      %1481 = vmatpush2.bf16.msra.mxu0 0
      %1482 = vmatprep.subr.bf16.mxu0 0
      %1483 = vmatpush2.bf16.msra.mxu0 0
      %1484 = vmatprep.mubr.bf16.mxu0 0
      %1485 = vmatmul.mubr.bf16.gmra.mxu0 %v356
      %v1486 = vpop.f32.mrf.mxu0
      %v1487 = vadd.f32 %v1438, %v1486
      %v1488 = vpop.f32.mrf.mxu0
      %v1489 = vpop.f32.mrf.mxu0
      %v1490 = vadd.f32 %v1438, %v1489
      %v1491 = vpop.f32.mrf.mxu0
      %1492 = vdwg.mxu0
      %v1493 = vxor.u32 %v1487, 2147483648
      %v1494 = vxor.u32 %v1490, 2147483648
      %v1495 = vmul.f32 %v1493, 1.442695
      %v1496 = vpow.pop %v1495
      %v1497 = vmul.f32 %v1494, 1.442695
      %v1498 = vpow.pop %v1497
      %v1499 = vadd.f32 %v1496, 1.0
      %v1500 = vadd.f32 %v1498, 1.0
      %v1501 = vrcp.pop %v1499
      %v1502 = vmul.f32 1.0, %v1501
      %v1503 = vrcp.pop %v1500
      %v1504 = vmul.f32 1.0, %v1503
      %v1505 = vtanh.pop %v1487
      %v1506 = vtanh.pop %v1490
      %v1507 = vmul.f32 %v1502, 0.0
      %v1508 = vmul.f32 %v1504, 0.0
      %1511 = vrot.lane.b32.xlu0 %v1505, 32
      %v1512 = vpop.permute.xlu0 %1511
      %1513 = vrot.lane.b32.xlu0 %v1506, 32
      %v1514 = vpop.permute.xlu0 %1513
      %v1517 = vmul.f32 %v1502, %v1512
      %v1518 = vmul.f32 %v1504, %v1514
      %1521 = vrot.lane.b32.xlu0 %v1517, 32
      %v1522 = vpop.permute.xlu0 %1521
      %1523 = vrot.lane.b32.xlu0 %v1518, 32
      %v1524 = vpop.permute.xlu0 %1523
      %v1527 = vadd.f32 %v1507, %v1522
      %v1528 = vadd.f32 %v1508, %v1524
      %v1529 = vtanh.pop %v1527
      %v1530 = vtanh.pop %v1528
      %1533 = vrot.lane.b32.xlu0 %v1529, 32
      %v1534 = vpop.permute.xlu0 %1533
      %1535 = vrot.lane.b32.xlu0 %v1530, 32
      %v1536 = vpop.permute.xlu0 %1535
      %v1539 = vmul.f32 %v1502, %v1534
      %v1540 = vmul.f32 %v1504, %v1536
      %v1541 = vld [vmem:[%s8] sm:$0xf]
      %v1542 = vld [vmem:[%s8 + $0x4] sm:$0xf]
      %v1543 = vld [vmem:[%s8 + $0x8] sm:$0xf]
      %v1544 = vld [vmem:[%s8 + $0xc] sm:$0xf]
      %v1545 = vld [vmem:[%s8 + $0x10] sm:$0xf]
      %v1546 = vld [vmem:[%s8 + $0x14] sm:$0xf]
      %v1547 = vld [vmem:[%s8 + $0x18] sm:$0xf]
      %v1548 = vld [vmem:[%s8 + $0x1c] sm:$0xf]
      %v1549 = vpack.c.bf16 %v1405, %v1404
      %v1550 = vpack.c.bf16 %v1540, %v1539
      %1552 = vrot.lane.b32.xlu0 %v1550, 64
      %v1553 = vpop.permute.xlu0 %1552
      %v1558 = vunpack.c.l.b16 %v1545
      %v1559 = vunpack.c.l.b16 %v1546
      %v1560 = vunpack.c.l.b16 %v1547
      %v1561 = vunpack.c.l.b16 %v1548
      %v1562 = vpack.c.b16 %v1559, %v1558
      %v1563 = vpack.c.b16 %v1561, %v1560
      %v1567 = vsel %vm333, %v1553, 0
      %1569 = vmatprep.subr.bf16.mxu0 0
      %1570 = vmatpush1.bf16.msra.mxu0 0
      %1571 = vmatprep.subr.bf16.mxu0 0
      %1572 = vmatpush1.bf16.msra.mxu0 0
      %1573 = vmatprep.subr.bf16.mxu0 0
      %1574 = vmatpush1.bf16.msra.mxu0 0
      %1575 = vmatprep.subr.bf16.mxu0 0
      %1576 = vmatpush1.bf16.msra.mxu0 0
      %1577 = vmatprep.subr.bf16.mxu0 0
      %1578 = vmatpush1.bf16.msra.mxu0 0
      %1579 = vmatprep.subr.bf16.mxu0 0
      %1580 = vmatpush1.bf16.msra.mxu0 0
      %1581 = vmatprep.subr.bf16.mxu0 0
      %1582 = vmatpush1.bf16.msra.mxu0 %v1563
      %1583 = vmatprep.subr.bf16.mxu0 0
      %1584 = vmatpush1.bf16.msra.mxu0 %v1562
      %1585 = vmatprep.subr.bf16.mxu0 0
      %1586 = vmatpush2.bf16.msra.mxu0 0
      %1587 = vmatprep.subr.bf16.mxu0 0
      %1588 = vmatpush2.bf16.msra.mxu0 0
      %1589 = vmatprep.subr.bf16.mxu0 0
      %1590 = vmatpush2.bf16.msra.mxu0 0
      %1591 = vmatprep.subr.bf16.mxu0 0
      %1592 = vmatpush2.bf16.msra.mxu0 0
      %1593 = vmatprep.subr.bf16.mxu0 0
      %1594 = vmatpush2.bf16.msra.mxu0 0
      %1595 = vmatprep.subr.bf16.mxu0 0
      %1596 = vmatpush2.bf16.msra.mxu0 0
      %1597 = vmatprep.subr.bf16.mxu0 0
      %1598 = vmatpush2.bf16.msra.mxu0 0
      %1599 = vmatprep.subr.bf16.mxu0 0
      %1600 = vmatpush2.bf16.msra.mxu0 0
      %1601 = vmatprep.mubr.bf16.mxu0 0
      %1602 = vmatmul.mubr.bf16.gmra.mxu0 %v1567
      %v1603 = vpop.f32.mrf.mxu0
      %v1604 = vadd.f32 0.0, %v1603
      %v1605 = vpop.f32.mrf.mxu0
      %v1606 = vpop.f32.mrf.mxu0
      %v1607 = vadd.f32 0.0, %v1606
      %v1608 = vpop.f32.mrf.mxu0
      %1609 = vdwg.mxu0
      %1611 = vrot.lane.b32.xlu0 %v1549, 64
      %v1612 = vpop.permute.xlu0 %1611
      %v1617 = vunpack.c.l.b16 %v1541
      %v1618 = vunpack.c.l.b16 %v1542
      %v1619 = vunpack.c.l.b16 %v1543
      %v1620 = vunpack.c.l.b16 %v1544
      %v1621 = vpack.c.b16 %v1618, %v1617
      %v1622 = vpack.c.b16 %v1620, %v1619
      %v1626 = vsel %vm333, %v1612, 0
      %1628 = vmatprep.subr.bf16.mxu0 0
      %1629 = vmatpush1.bf16.msra.mxu0 0
      %1630 = vmatprep.subr.bf16.mxu0 0
      %1631 = vmatpush1.bf16.msra.mxu0 0
      %1632 = vmatprep.subr.bf16.mxu0 0
      %1633 = vmatpush1.bf16.msra.mxu0 0
      %1634 = vmatprep.subr.bf16.mxu0 0
      %1635 = vmatpush1.bf16.msra.mxu0 0
      %1636 = vmatprep.subr.bf16.mxu0 0
      %1637 = vmatpush1.bf16.msra.mxu0 0
      %1638 = vmatprep.subr.bf16.mxu0 0
      %1639 = vmatpush1.bf16.msra.mxu0 0
      %1640 = vmatprep.subr.bf16.mxu0 0
      %1641 = vmatpush1.bf16.msra.mxu0 %v1622
      %1642 = vmatprep.subr.bf16.mxu0 0
      %1643 = vmatpush1.bf16.msra.mxu0 %v1621
      %1644 = vmatprep.subr.bf16.mxu0 0
      %1645 = vmatpush2.bf16.msra.mxu0 0
      %1646 = vmatprep.subr.bf16.mxu0 0
      %1647 = vmatpush2.bf16.msra.mxu0 0
      %1648 = vmatprep.subr.bf16.mxu0 0
      %1649 = vmatpush2.bf16.msra.mxu0 0
      %1650 = vmatprep.subr.bf16.mxu0 0
      %1651 = vmatpush2.bf16.msra.mxu0 0
      %1652 = vmatprep.subr.bf16.mxu0 0
      %1653 = vmatpush2.bf16.msra.mxu0 0
      %1654 = vmatprep.subr.bf16.mxu0 0
      %1655 = vmatpush2.bf16.msra.mxu0 0
      %1656 = vmatprep.subr.bf16.mxu0 0
      %1657 = vmatpush2.bf16.msra.mxu0 0
      %1658 = vmatprep.subr.bf16.mxu0 0
      %1659 = vmatpush2.bf16.msra.mxu0 0
      %1660 = vmatprep.mubr.bf16.mxu0 0
      %1661 = vmatmul.mubr.bf16.gmra.mxu0 %v1626
      %v1662 = vpop.f32.mrf.mxu0
      %v1663 = vadd.f32 %v1604, %v1662
      %v1664 = vpop.f32.mrf.mxu0
      %v1665 = vpop.f32.mrf.mxu0
      %v1666 = vadd.f32 %v1607, %v1665
      %v1667 = vpop.f32.mrf.mxu0
      %1668 = vdwg.mxu0
      %v1669 = vld [vmem:[%s9] sm:$0x1]
      %v1671 = vlaneseq
      %v1672 = vshrl.u32 %v1671, 7
      %v1673 = vsub.s32 0, %v1672
      %v1674 = vrot.slane %v1669, %v1673
      %v1676 = vadd.f32 %v1663, %v1674
      %v1677 = vadd.f32 %v1666, %v1674
      %vm1678 = vcmask 31744
      %v1679 = vsel %vm1678, %v1676, -inf
      %1680 = vmax.xlane.f32.xlu0 %v1679
      %v1681 = vpop.xlane.xlu0 %1680
      %v1682 = vsel %vm1678, %v1677, -inf
      %1683 = vmax.xlane.f32.xlu0 %v1682
      %v1684 = vpop.xlane.xlu0 %1683
      %v1685 = vsub.f32 %v1676, %v1681
      %v1686 = vsub.f32 %v1677, %v1684
      %v1687 = vmul.f32 %v1685, 1.442695
      %v1688 = vpow.pop %v1687
      %v1689 = vmul.f32 %v1686, 1.442695
      %v1690 = vpow.pop %v1689
      %v1691 = vsel %vm1678, %v1688, 0.0
      %1692 = vadd.xlane.f32.xlu0 %v1691
      %v1693 = vpop.xlane.xlu0 %1692
      %v1694 = vsel %vm1678, %v1690, 0.0
      %1695 = vadd.xlane.f32.xlu0 %v1694
      %v1696 = vpop.xlane.xlu0 %1695
      %v1697 = vrcp.pop %v1693
      %v1698 = vmul.f32 %v1688, %v1697
      %v1699 = vrcp.pop %v1696
      %v1700 = vmul.f32 %v1690, %v1699
      %1701 = vst.msk [vmem:[%s10] sm:$0xff] %vm1678, %v1698
      %1702 = vst.msk [vmem:[%s10 + $0x8] sm:$0xff] %vm1678, %v1700
    $region61: #{tpu_custom_call.1} parent=1 // pred_fallthru
      _
    // Predicated region
    $region62: #{tpu_custom_call.1} parent=1 // pred_check
      _
    $region63: #{tpu_custom_call.1} parent=1 // pred_check_branch
      %1704 = sbr.rel (0) target = $region65
    $region64: #{tpu_custom_call.1} parent=1 // pred_region
      _
    $region65: #{tpu_custom_call.1} parent=1 // pred_fallthru
      _
    // Predicated region
    $region66: #{tpu_custom_call.1} parent=1 // pred_check
      _
    $region67: #{tpu_custom_call.1} parent=1 // pred_check_branch
      %1706 = sbr.rel (0) target = $region69
    $region68: #{tpu_custom_call.1} parent=1 // pred_region
      _
    $region69: #{tpu_custom_call.1} parent=1 // pred_fallthru
      _
    %1707 = vsyncpa [#allocation6], 1
    %1708 = vsyncpa [#allocation8], 1

</llo_original>
